<compile_context>
chip_gen: v5e
topology: v5e:2x2
jax: 0.10.0
libtpu: 0.0.40
codegen_flags: <defaults>
</compile_context>

<pallas_src>
import functools

import jax
import jax.numpy as jnp
from jax.experimental import pallas as pl
from jax.experimental.pallas import tpu as pltpu


_VMEM_SPEC = pl.BlockSpec(memory_space=pltpu.MemorySpace.VMEM)


def _round_up(n, m):
    return (n + m - 1) // m * m


# ------------------------------ fused kernel --------------------------------

def _fused_lstm_fc_kernel(x_ref, slab_ref, out_ref, *,
                          layer_meta, fc_meta, num_layers, seq_len,
                          batch, batch_pad, hidden):
    """Fused multi-layer LSTM + FC head.

    x_ref    : (T*Bp, feat) f32, time-major, batch padded to Bp=8 rows/step.
    slab_ref : (rows, lanes) f32, all weights/biases packed with static
               8-aligned row offsets (see prepare_lstm_branch_params).
    out_ref  : (B, out_dim) f32.
    """
    H = hidden
    G = 4 * H
    Bp = batch_pad

    layer_in = x_ref[...].astype(jnp.bfloat16)          # (T*Bp, feat)
    h = None
    for l in range(num_layers):
        m = layer_meta[l]
        in_dim = m["in_dim"]
        wih = slab_ref[m["wih"]:m["wih"] + in_dim, :G].astype(jnp.bfloat16)
        whh = slab_ref[m["whh"]:m["whh"] + H, :G].astype(jnp.bfloat16)
        b = slab_ref[m["b"]:m["b"] + 1, :G]             # f32, g cols pre*2

        # Batched input projection for all timesteps in one MXU matmul
        # (off the recurrence critical path), bias folded in here.
        gx = jnp.dot(layer_in, wih, preferred_element_type=jnp.float32) + b

        h = jnp.zeros((Bp, H), jnp.float32)
        c = jnp.zeros((Bp, H), jnp.float32)
        is_last = (l == num_layers - 1)
        hs = []
        # T is a small compile-time constant -> static unrolled recurrence.
        for t in range(seq_len):
            r = t * Bp                                   # aligned (8,128) row
            gates = gx[r:r + Bp, :] + jnp.dot(
                h.astype(jnp.bfloat16), whh,
                preferred_element_type=jnp.float32)
            sig = jax.nn.sigmoid(gates)                  # one EUP pass, 4H lanes
            i_g = sig[:, 0 * H:1 * H]
            f_g = sig[:, 1 * H:2 * H]
            g_g = 2.0 * sig[:, 2 * H:3 * H] - 1.0        # == tanh(raw g gate)
            o_g = sig[:, 3 * H:4 * H]
            c = f_g * c + i_g * g_g
            h = o_g * jnp.tanh(c)
            if not is_last:
                hs.append(h)
        if not is_last:
            # Inter-layer sequence stays in registers: no VMEM scratch,
            # no per-step masked stores, no store->load roundtrip.
            layer_in = jnp.concatenate(hs, axis=0).astype(jnp.bfloat16)

    # FC head on the final hidden state of the last layer.
    out_dim = fc_meta["out_dim"]
    wfc = slab_ref[fc_meta["w"]:fc_meta["w"] + H, :out_dim].astype(jnp.bfloat16)
    bfc = slab_ref[fc_meta["b"]:fc_meta["b"] + 1, :out_dim]
    res = jnp.dot(h.astype(jnp.bfloat16), wfc,
                  preferred_element_type=jnp.float32) + bfc
    out_ref[...] = res[:batch, :]


# --------------------------- parameter handling ------------------------------

def init_lstm_branch_params(key, input_dim, hidden_dim, num_layers,
                            convnext_dim):
    """Deterministic parameter init (PyTorch-style U(-1/sqrt(H), 1/sqrt(H)))."""
    params = {"layers": []}
    bound = 1.0 / jnp.sqrt(jnp.float32(hidden_dim))
    for l in range(num_layers):
        in_dim = input_dim if l == 0 else hidden_dim
        key, k1, k2, k3, k4 = jax.random.split(key, 5)
        w_ih = jax.random.uniform(k1, (4 * hidden_dim, in_dim),
                                  jnp.float32, -bound, bound)
        w_hh = jax.random.uniform(k2, (4 * hidden_dim, hidden_dim),
                                  jnp.float32, -bound, bound)
        b_ih = jax.random.uniform(k3, (4 * hidden_dim,),
                                  jnp.float32, -bound, bound)
        b_hh = jax.random.uniform(k4, (4 * hidden_dim,),
                                  jnp.float32, -bound, bound)
        params["layers"].append(
            {"w_ih": w_ih, "w_hh": w_hh, "b_ih": b_ih, "b_hh": b_hh})
    key, k5, k6 = jax.random.split(key, 3)
    params["fc_w"] = jax.random.uniform(k5, (convnext_dim, hidden_dim),
                                        jnp.float32, -bound, bound)
    params["fc_b"] = jax.random.uniform(k6, (convnext_dim,),
                                        jnp.float32, -bound, bound)
    return params


def prepare_lstm_branch_params(params, hidden_dim):
    """One-time prep: transpose, fuse biases, pre-scale g gate by 2, and pack
    everything into a single (8,128)-padded f32 slab with static row offsets."""
    H = hidden_dim
    G = 4 * H
    out_dim = params["fc_b"].shape[0]
    lanes = _round_up(max(G, out_dim), 128)

    def pad_block(a):
        rows, cols = a.shape
        return jnp.pad(a, ((0, _round_up(rows, 8) - rows), (0, lanes - cols)))

    # Pre-scale the g-gate (cell candidate) rows by 2 so the kernel can use the
    # sigmoid-only trick: tanh(z) = 2*sigmoid(2z) - 1.
    g_scale = jnp.ones((G,), jnp.float32).at[2 * H:3 * H].set(2.0)

    blocks, layer_meta, row = [], [], 0
    for lp in params["layers"]:
        wih_t = (lp["w_ih"] * g_scale[:, None]).T            # (in, 4H)
        whh_t = (lp["w_hh"] * g_scale[:, None]).T            # (H, 4H)
        b = ((lp["b_ih"] + lp["b_hh"]) * g_scale)[None, :]   # (1, 4H)
        in_dim = wih_t.shape[0]
        meta = {"in_dim": in_dim, "wih": row}
        blocks.append(pad_block(wih_t)); row += _round_up(in_dim, 8)
        meta["whh"] = row
        blocks.append(pad_block(whh_t)); row += _round_up(H, 8)
        meta["b"] = row
        blocks.append(pad_block(b)); row += 8
        layer_meta.append(meta)

    fc_meta = {"out_dim": out_dim, "w": row}
    blocks.append(pad_block(params["fc_w"].T)); row += _round_up(H, 8)
    fc_meta["b"] = row
    blocks.append(pad_block(params["fc_b"][None, :])); row += 8

    slab = jnp.concatenate(blocks, axis=0)                   # (rows, lanes) f32
    return {"slab": slab, "layer_meta": layer_meta, "fc_meta": fc_meta,
            "hidden": H}


# ------------------------------ forward wrapper ------------------------------

def lstm_branch_forward(prepped, raw_h):
    """Fused Pallas implementation of LSTMBranch.forward."""
    B, C, D, Hh, W = raw_h.shape
    feat = C * Hh * W
    hidden = prepped["hidden"]
    Bp = _round_up(B, 8)
    out_dim = prepped["fc_meta"]["out_dim"]
    num_layers = len(prepped["layer_meta"])
    assert prepped["layer_meta"][0]["in_dim"] == feat

    # Matches torch .view(B, D, -1) on a contiguous NCDHW tensor, then a
    # time-major, batch-padded-to-8 2-D layout so each per-step gate row block
    # inside the kernel is an aligned (8,128) tile.  (Fuses into one tiny XLA
    # op; could be folded into the kernel input in a follow-up.)
    x = jnp.reshape(raw_h.astype(jnp.float32), (B, D, feat))
    x = jnp.swapaxes(x, 0, 1)                        # (D, B, feat)
    x = jnp.pad(x, ((0, 0), (0, Bp - B), (0, 0)))    # (D, Bp, feat)
    x_tm = jnp.reshape(x, (D * Bp, feat))

    # Advisory cost hint so XLA can schedule this tiny branch alongside
    # heavier work in the surrounding model.
    flops = 0
    in_dim = feat
    for _ in range(num_layers):
        flops += 2 * (D * Bp) * in_dim * (4 * hidden)   # batched input proj
        flops += 2 * D * Bp * hidden * (4 * hidden)     # recurrent matmuls
        in_dim = hidden
    flops += 2 * Bp * hidden * out_dim
    transcendentals = num_layers * D * Bp * (4 * hidden + hidden)
    bytes_accessed = 4 * (int(x_tm.size) + int(prepped["slab"].size)
                          + B * out_dim)

    kernel = functools.partial(
        _fused_lstm_fc_kernel,
        layer_meta=prepped["layer_meta"], fc_meta=prepped["fc_meta"],
        num_layers=num_layers, seq_len=D, batch=B, batch_pad=Bp,
        hidden=hidden)

    return pl.pallas_call(
        kernel,
        out_shape=jax.ShapeDtypeStruct((B, out_dim), jnp.float32),
        in_specs=[_VMEM_SPEC, _VMEM_SPEC],
        out_specs=_VMEM_SPEC,
        cost_estimate=pl.CostEstimate(flops=flops,
                                      transcendentals=transcendentals,
                                      bytes_accessed=bytes_accessed),
    )(x_tm, prepped["slab"])


# ------------------------------ pure-JAX reference ---------------------------

def _reference_forward(params, raw_h, hidden_dim):
    B, C, D, H, W = raw_h.shape
    x = jnp.reshape(raw_h.astype(jnp.float32), (B, D, C * H * W))
    for lp in params["layers"]:
        h = jnp.zeros((B, hidden_dim), jnp.float32)
        c = jnp.zeros((B, hidden_dim), jnp.float32)
        outs = []
        for t in range(D):
            g = (x[:, t, :] @ lp["w_ih"].T + h @ lp["w_hh"].T
                 + lp["b_ih"] + lp["b_hh"])
            i_g = jax.nn.sigmoid(g[:, 0 * hidden_dim:1 * hidden_dim])
            f_g = jax.nn.sigmoid(g[:, 1 * hidden_dim:2 * hidden_dim])
            g_g = jnp.tanh(g[:, 2 * hidden_dim:3 * hidden_dim])
            o_g = jax.nn.sigmoid(g[:, 3 * hidden_dim:4 * hidden_dim])
            c = f_g * c + i_g * g_g
            h = o_g * jnp.tanh(c)
            outs.append(h)
        x = jnp.stack(outs, axis=1)
    return x[:, -1, :] @ params["fc_w"].T + params["fc_b"]


# ----------------------------------- main ------------------------------------

if __name__ == "__main__":
    # Small shapes consistent with the module:
    B, C, D, H, W = 2, 4, 8, 4, 4          # raw_h: (B, C, depth, height, width)
    input_dim = C * H * W                  # 64  (must equal C*H*W for .view)
    hidden_dim = 32
    num_layers = 2
    convnext_dim = 16

    key = jax.random.PRNGKey(0)
    key, kx, kp = jax.random.split(key, 3)
    raw_h = jax.random.normal(kx, (B, C, D, H, W), jnp.float32)
    params = init_lstm_branch_params(kp, input_dim, hidden_dim, num_layers,
                                     convnext_dim)
    prepped = prepare_lstm_branch_params(params, hidden_dim)  # one-time prep

    out = jax.block_until_ready(lstm_branch_forward(prepped, raw_h))

    ref = _reference_forward(params, raw_h, hidden_dim)
    assert out.shape == (B, convnext_dim)
    # bf16 MXU operands with f32 accumulation -> looser tolerance vs f32 ref.
    assert jnp.allclose(out, ref, atol=5e-2, rtol=5e-2), "mismatch vs reference"

    print("KERNEL_OK")
</pallas_src>

<mosaic_0001>
module attributes {stable_mosaic.version = 11 : i64} {
  func.func @_fused_lstm_fc_kernel(%arg0: memref<64x64xf32, #tpu.memory_space<vmem>>, %arg1: memref<216x128xf32, #tpu.memory_space<vmem>>, %arg2: memref<2x16xf32, #tpu.memory_space<vmem>>) attributes {dimension_semantics = [], scalar_prefetch = 0 : i64, scratch_operands = 0 : i64, tpu.core_type = #tpu.core_type<tc>} {
    %c0 = arith.constant 0 : index
    %c0_0 = arith.constant 0 : index
    %0 = vector.load %arg0[%c0, %c0_0] : memref<64x64xf32, #tpu.memory_space<vmem>>, vector<64x64xf32>
    %1 = arith.truncf %0 : vector<64x64xf32> to vector<64x64xbf16>
    %c0_1 = arith.constant 0 : index
    %c0_2 = arith.constant 0 : index
    %2 = vector.load %arg1[%c0_1, %c0_2] : memref<216x128xf32, #tpu.memory_space<vmem>>, vector<64x128xf32>
    %3 = arith.truncf %2 : vector<64x128xf32> to vector<64x128xbf16>
    %c64 = arith.constant 64 : index
    %c0_3 = arith.constant 0 : index
    %4 = vector.load %arg1[%c64, %c0_3] : memref<216x128xf32, #tpu.memory_space<vmem>>, vector<32x128xf32>
    %5 = arith.truncf %4 : vector<32x128xf32> to vector<32x128xbf16>
    %c96 = arith.constant 96 : index
    %c0_4 = arith.constant 0 : index
    %6 = vector.load %arg1[%c96, %c0_4] : memref<216x128xf32, #tpu.memory_space<vmem>>, vector<1x128xf32>
    %cst = arith.constant dense<0.000000e+00> : vector<64x128xf32>
    %7 = tpu.matmul %1, %3, %cst {dimension_numbers = #tpu.dot_dimension_numbers<[1], [0], [0], [1], [0, 0, 1, 1], [], []>} : vector<64x64xbf16>, vector<64x128xbf16>, vector<64x128xf32> -> vector<64x128xf32>
    %8 = vector.broadcast %6 : vector<1x128xf32> to vector<64x128xf32>
    %9 = arith.addf %7, %8 : vector<64x128xf32>
    %cst_5 = arith.constant 0.000000e+00 : f32
    %10 = vector.broadcast %cst_5 : f32 to vector<8x32xf32>
    %cst_6 = arith.constant 0.000000e+00 : f32
    %11 = vector.broadcast %cst_6 : f32 to vector<8x32xf32>
    %12 = vector.extract_strided_slice %9 {offsets = [0, 0], sizes = [8, 128], strides = [1, 1]} : vector<64x128xf32> to vector<8x128xf32>
    %13 = arith.truncf %10 : vector<8x32xf32> to vector<8x32xbf16>
    %cst_7 = arith.constant dense<0.000000e+00> : vector<8x128xf32>
    %14 = tpu.matmul %13, %5, %cst_7 {dimension_numbers = #tpu.dot_dimension_numbers<[1], [0], [0], [1], [0, 0, 1, 1], [], []>} : vector<8x32xbf16>, vector<32x128xbf16>, vector<8x128xf32> -> vector<8x128xf32>
    %15 = arith.addf %12, %14 : vector<8x128xf32>
    %16 = arith.negf %15 : vector<8x128xf32>
    %17 = math.exp %16 : vector<8x128xf32>
    %cst_8 = arith.constant 1.000000e+00 : f32
    %18 = vector.broadcast %cst_8 : f32 to vector<8x128xf32>
    %19 = arith.addf %18, %17 : vector<8x128xf32>
    %20 = arith.divf %18, %19 : vector<8x128xf32>
    %21 = vector.extract_strided_slice %20 {offsets = [0, 0], sizes = [8, 32], strides = [1, 1]} : vector<8x128xf32> to vector<8x32xf32>
    %22 = vector.extract_strided_slice %20 {offsets = [0, 32], sizes = [8, 32], strides = [1, 1]} : vector<8x128xf32> to vector<8x32xf32>
    %23 = vector.extract_strided_slice %20 {offsets = [0, 64], sizes = [8, 32], strides = [1, 1]} : vector<8x128xf32> to vector<8x32xf32>
    %cst_9 = arith.constant 2.000000e+00 : f32
    %24 = vector.broadcast %cst_9 : f32 to vector<8x32xf32>
    %25 = arith.mulf %24, %23 : vector<8x32xf32>
    %cst_10 = arith.constant 1.000000e+00 : f32
    %26 = vector.broadcast %cst_10 : f32 to vector<8x32xf32>
    %27 = arith.subf %25, %26 : vector<8x32xf32>
    %28 = vector.extract_strided_slice %20 {offsets = [0, 96], sizes = [8, 32], strides = [1, 1]} : vector<8x128xf32> to vector<8x32xf32>
    %29 = arith.mulf %22, %11 : vector<8x32xf32>
    %30 = arith.mulf %21, %27 : vector<8x32xf32>
    %31 = arith.addf %29, %30 : vector<8x32xf32>
    %32 = math.tanh %31 : vector<8x32xf32>
    %33 = arith.mulf %28, %32 : vector<8x32xf32>
    %34 = vector.extract_strided_slice %9 {offsets = [8, 0], sizes = [8, 128], strides = [1, 1]} : vector<64x128xf32> to vector<8x128xf32>
    %35 = arith.truncf %33 : vector<8x32xf32> to vector<8x32xbf16>
    %cst_11 = arith.constant dense<0.000000e+00> : vector<8x128xf32>
    %36 = tpu.matmul %35, %5, %cst_11 {dimension_numbers = #tpu.dot_dimension_numbers<[1], [0], [0], [1], [0, 0, 1, 1], [], []>} : vector<8x32xbf16>, vector<32x128xbf16>, vector<8x128xf32> -> vector<8x128xf32>
    %37 = arith.addf %34, %36 : vector<8x128xf32>
    %38 = arith.negf %37 : vector<8x128xf32>
    %39 = math.exp %38 : vector<8x128xf32>
    %cst_12 = arith.constant 1.000000e+00 : f32
    %40 = vector.broadcast %cst_12 : f32 to vector<8x128xf32>
    %41 = arith.addf %40, %39 : vector<8x128xf32>
    %42 = arith.divf %40, %41 : vector<8x128xf32>
    %43 = vector.extract_strided_slice %42 {offsets = [0, 0], sizes = [8, 32], strides = [1, 1]} : vector<8x128xf32> to vector<8x32xf32>
    %44 = vector.extract_strided_slice %42 {offsets = [0, 32], sizes = [8, 32], strides = [1, 1]} : vector<8x128xf32> to vector<8x32xf32>
    %45 = vector.extract_strided_slice %42 {offsets = [0, 64], sizes = [8, 32], strides = [1, 1]} : vector<8x128xf32> to vector<8x32xf32>
    %cst_13 = arith.constant 2.000000e+00 : f32
    %46 = vector.broadcast %cst_13 : f32 to vector<8x32xf32>
    %47 = arith.mulf %46, %45 : vector<8x32xf32>
    %cst_14 = arith.constant 1.000000e+00 : f32
    %48 = vector.broadcast %cst_14 : f32 to vector<8x32xf32>
    %49 = arith.subf %47, %48 : vector<8x32xf32>
    %50 = vector.extract_strided_slice %42 {offsets = [0, 96], sizes = [8, 32], strides = [1, 1]} : vector<8x128xf32> to vector<8x32xf32>
    %51 = arith.mulf %44, %31 : vector<8x32xf32>
    %52 = arith.mulf %43, %49 : vector<8x32xf32>
    %53 = arith.addf %51, %52 : vector<8x32xf32>
    %54 = math.tanh %53 : vector<8x32xf32>
    %55 = arith.mulf %50, %54 : vector<8x32xf32>
    %56 = vector.extract_strided_slice %9 {offsets = [16, 0], sizes = [8, 128], strides = [1, 1]} : vector<64x128xf32> to vector<8x128xf32>
    %57 = arith.truncf %55 : vector<8x32xf32> to vector<8x32xbf16>
    %cst_15 = arith.constant dense<0.000000e+00> : vector<8x128xf32>
    %58 = tpu.matmul %57, %5, %cst_15 {dimension_numbers = #tpu.dot_dimension_numbers<[1], [0], [0], [1], [0, 0, 1, 1], [], []>} : vector<8x32xbf16>, vector<32x128xbf16>, vector<8x128xf32> -> vector<8x128xf32>
    %59 = arith.addf %56, %58 : vector<8x128xf32>
    %60 = arith.negf %59 : vector<8x128xf32>
    %61 = math.exp %60 : vector<8x128xf32>
    %cst_16 = arith.constant 1.000000e+00 : f32
    %62 = vector.broadcast %cst_16 : f32 to vector<8x128xf32>
    %63 = arith.addf %62, %61 : vector<8x128xf32>
    %64 = arith.divf %62, %63 : vector<8x128xf32>
    %65 = vector.extract_strided_slice %64 {offsets = [0, 0], sizes = [8, 32], strides = [1, 1]} : vector<8x128xf32> to vector<8x32xf32>
    %66 = vector.extract_strided_slice %64 {offsets = [0, 32], sizes = [8, 32], strides = [1, 1]} : vector<8x128xf32> to vector<8x32xf32>
    %67 = vector.extract_strided_slice %64 {offsets = [0, 64], sizes = [8, 32], strides = [1, 1]} : vector<8x128xf32> to vector<8x32xf32>
    %cst_17 = arith.constant 2.000000e+00 : f32
    %68 = vector.broadcast %cst_17 : f32 to vector<8x32xf32>
    %69 = arith.mulf %68, %67 : vector<8x32xf32>
    %cst_18 = arith.constant 1.000000e+00 : f32
    %70 = vector.broadcast %cst_18 : f32 to vector<8x32xf32>
    %71 = arith.subf %69, %70 : vector<8x32xf32>
    %72 = vector.extract_strided_slice %64 {offsets = [0, 96], sizes = [8, 32], strides = [1, 1]} : vector<8x128xf32> to vector<8x32xf32>
    %73 = arith.mulf %66, %53 : vector<8x32xf32>
    %74 = arith.mulf %65, %71 : vector<8x32xf32>
    %75 = arith.addf %73, %74 : vector<8x32xf32>
    %76 = math.tanh %75 : vector<8x32xf32>
    %77 = arith.mulf %72, %76 : vector<8x32xf32>
    %78 = vector.extract_strided_slice %9 {offsets = [24, 0], sizes = [8, 128], strides = [1, 1]} : vector<64x128xf32> to vector<8x128xf32>
    %79 = arith.truncf %77 : vector<8x32xf32> to vector<8x32xbf16>
    %cst_19 = arith.constant dense<0.000000e+00> : vector<8x128xf32>
    %80 = tpu.matmul %79, %5, %cst_19 {dimension_numbers = #tpu.dot_dimension_numbers<[1], [0], [0], [1], [0, 0, 1, 1], [], []>} : vector<8x32xbf16>, vector<32x128xbf16>, vector<8x128xf32> -> vector<8x128xf32>
    %81 = arith.addf %78, %80 : vector<8x128xf32>
    %82 = arith.negf %81 : vector<8x128xf32>
    %83 = math.exp %82 : vector<8x128xf32>
    %cst_20 = arith.constant 1.000000e+00 : f32
    %84 = vector.broadcast %cst_20 : f32 to vector<8x128xf32>
    %85 = arith.addf %84, %83 : vector<8x128xf32>
    %86 = arith.divf %84, %85 : vector<8x128xf32>
    %87 = vector.extract_strided_slice %86 {offsets = [0, 0], sizes = [8, 32], strides = [1, 1]} : vector<8x128xf32> to vector<8x32xf32>
    %88 = vector.extract_strided_slice %86 {offsets = [0, 32], sizes = [8, 32], strides = [1, 1]} : vector<8x128xf32> to vector<8x32xf32>
    %89 = vector.extract_strided_slice %86 {offsets = [0, 64], sizes = [8, 32], strides = [1, 1]} : vector<8x128xf32> to vector<8x32xf32>
    %cst_21 = arith.constant 2.000000e+00 : f32
    %90 = vector.broadcast %cst_21 : f32 to vector<8x32xf32>
    %91 = arith.mulf %90, %89 : vector<8x32xf32>
    %cst_22 = arith.constant 1.000000e+00 : f32
    %92 = vector.broadcast %cst_22 : f32 to vector<8x32xf32>
    %93 = arith.subf %91, %92 : vector<8x32xf32>
    %94 = vector.extract_strided_slice %86 {offsets = [0, 96], sizes = [8, 32], strides = [1, 1]} : vector<8x128xf32> to vector<8x32xf32>
    %95 = arith.mulf %88, %75 : vector<8x32xf32>
    %96 = arith.mulf %87, %93 : vector<8x32xf32>
    %97 = arith.addf %95, %96 : vector<8x32xf32>
    %98 = math.tanh %97 : vector<8x32xf32>
    %99 = arith.mulf %94, %98 : vector<8x32xf32>
    %100 = vector.extract_strided_slice %9 {offsets = [32, 0], sizes = [8, 128], strides = [1, 1]} : vector<64x128xf32> to vector<8x128xf32>
    %101 = arith.truncf %99 : vector<8x32xf32> to vector<8x32xbf16>
    %cst_23 = arith.constant dense<0.000000e+00> : vector<8x128xf32>
    %102 = tpu.matmul %101, %5, %cst_23 {dimension_numbers = #tpu.dot_dimension_numbers<[1], [0], [0], [1], [0, 0, 1, 1], [], []>} : vector<8x32xbf16>, vector<32x128xbf16>, vector<8x128xf32> -> vector<8x128xf32>
    %103 = arith.addf %100, %102 : vector<8x128xf32>
    %104 = arith.negf %103 : vector<8x128xf32>
    %105 = math.exp %104 : vector<8x128xf32>
    %cst_24 = arith.constant 1.000000e+00 : f32
    %106 = vector.broadcast %cst_24 : f32 to vector<8x128xf32>
    %107 = arith.addf %106, %105 : vector<8x128xf32>
    %108 = arith.divf %106, %107 : vector<8x128xf32>
    %109 = vector.extract_strided_slice %108 {offsets = [0, 0], sizes = [8, 32], strides = [1, 1]} : vector<8x128xf32> to vector<8x32xf32>
    %110 = vector.extract_strided_slice %108 {offsets = [0, 32], sizes = [8, 32], strides = [1, 1]} : vector<8x128xf32> to vector<8x32xf32>
    %111 = vector.extract_strided_slice %108 {offsets = [0, 64], sizes = [8, 32], strides = [1, 1]} : vector<8x128xf32> to vector<8x32xf32>
    %cst_25 = arith.constant 2.000000e+00 : f32
    %112 = vector.broadcast %cst_25 : f32 to vector<8x32xf32>
    %113 = arith.mulf %112, %111 : vector<8x32xf32>
    %cst_26 = arith.constant 1.000000e+00 : f32
    %114 = vector.broadcast %cst_26 : f32 to vector<8x32xf32>
    %115 = arith.subf %113, %114 : vector<8x32xf32>
    %116 = vector.extract_strided_slice %108 {offsets = [0, 96], sizes = [8, 32], strides = [1, 1]} : vector<8x128xf32> to vector<8x32xf32>
    %117 = arith.mulf %110, %97 : vector<8x32xf32>
    %118 = arith.mulf %109, %115 : vector<8x32xf32>
    %119 = arith.addf %117, %118 : vector<8x32xf32>
    %120 = math.tanh %119 : vector<8x32xf32>
    %121 = arith.mulf %116, %120 : vector<8x32xf32>
    %122 = vector.extract_strided_slice %9 {offsets = [40, 0], sizes = [8, 128], strides = [1, 1]} : vector<64x128xf32> to vector<8x128xf32>
    %123 = arith.truncf %121 : vector<8x32xf32> to vector<8x32xbf16>
    %cst_27 = arith.constant dense<0.000000e+00> : vector<8x128xf32>
    %124 = tpu.matmul %123, %5, %cst_27 {dimension_numbers = #tpu.dot_dimension_numbers<[1], [0], [0], [1], [0, 0, 1, 1], [], []>} : vector<8x32xbf16>, vector<32x128xbf16>, vector<8x128xf32> -> vector<8x128xf32>
    %125 = arith.addf %122, %124 : vector<8x128xf32>
    %126 = arith.negf %125 : vector<8x128xf32>
    %127 = math.exp %126 : vector<8x128xf32>
    %cst_28 = arith.constant 1.000000e+00 : f32
    %128 = vector.broadcast %cst_28 : f32 to vector<8x128xf32>
    %129 = arith.addf %128, %127 : vector<8x128xf32>
    %130 = arith.divf %128, %129 : vector<8x128xf32>
    %131 = vector.extract_strided_slice %130 {offsets = [0, 0], sizes = [8, 32], strides = [1, 1]} : vector<8x128xf32> to vector<8x32xf32>
    %132 = vector.extract_strided_slice %130 {offsets = [0, 32], sizes = [8, 32], strides = [1, 1]} : vector<8x128xf32> to vector<8x32xf32>
    %133 = vector.extract_strided_slice %130 {offsets = [0, 64], sizes = [8, 32], strides = [1, 1]} : vector<8x128xf32> to vector<8x32xf32>
    %cst_29 = arith.constant 2.000000e+00 : f32
    %134 = vector.broadcast %cst_29 : f32 to vector<8x32xf32>
    %135 = arith.mulf %134, %133 : vector<8x32xf32>
    %cst_30 = arith.constant 1.000000e+00 : f32
    %136 = vector.broadcast %cst_30 : f32 to vector<8x32xf32>
    %137 = arith.subf %135, %136 : vector<8x32xf32>
    %138 = vector.extract_strided_slice %130 {offsets = [0, 96], sizes = [8, 32], strides = [1, 1]} : vector<8x128xf32> to vector<8x32xf32>
    %139 = arith.mulf %132, %119 : vector<8x32xf32>
    %140 = arith.mulf %131, %137 : vector<8x32xf32>
    %141 = arith.addf %139, %140 : vector<8x32xf32>
    %142 = math.tanh %141 : vector<8x32xf32>
    %143 = arith.mulf %138, %142 : vector<8x32xf32>
    %144 = vector.extract_strided_slice %9 {offsets = [48, 0], sizes = [8, 128], strides = [1, 1]} : vector<64x128xf32> to vector<8x128xf32>
    %145 = arith.truncf %143 : vector<8x32xf32> to vector<8x32xbf16>
    %cst_31 = arith.constant dense<0.000000e+00> : vector<8x128xf32>
    %146 = tpu.matmul %145, %5, %cst_31 {dimension_numbers = #tpu.dot_dimension_numbers<[1], [0], [0], [1], [0, 0, 1, 1], [], []>} : vector<8x32xbf16>, vector<32x128xbf16>, vector<8x128xf32> -> vector<8x128xf32>
    %147 = arith.addf %144, %146 : vector<8x128xf32>
    %148 = arith.negf %147 : vector<8x128xf32>
    %149 = math.exp %148 : vector<8x128xf32>
    %cst_32 = arith.constant 1.000000e+00 : f32
    %150 = vector.broadcast %cst_32 : f32 to vector<8x128xf32>
    %151 = arith.addf %150, %149 : vector<8x128xf32>
    %152 = arith.divf %150, %151 : vector<8x128xf32>
    %153 = vector.extract_strided_slice %152 {offsets = [0, 0], sizes = [8, 32], strides = [1, 1]} : vector<8x128xf32> to vector<8x32xf32>
    %154 = vector.extract_strided_slice %152 {offsets = [0, 32], sizes = [8, 32], strides = [1, 1]} : vector<8x128xf32> to vector<8x32xf32>
    %155 = vector.extract_strided_slice %152 {offsets = [0, 64], sizes = [8, 32], strides = [1, 1]} : vector<8x128xf32> to vector<8x32xf32>
    %cst_33 = arith.constant 2.000000e+00 : f32
    %156 = vector.broadcast %cst_33 : f32 to vector<8x32xf32>
    %157 = arith.mulf %156, %155 : vector<8x32xf32>
    %cst_34 = arith.constant 1.000000e+00 : f32
    %158 = vector.broadcast %cst_34 : f32 to vector<8x32xf32>
    %159 = arith.subf %157, %158 : vector<8x32xf32>
    %160 = vector.extract_strided_slice %152 {offsets = [0, 96], sizes = [8, 32], strides = [1, 1]} : vector<8x128xf32> to vector<8x32xf32>
    %161 = arith.mulf %154, %141 : vector<8x32xf32>
    %162 = arith.mulf %153, %159 : vector<8x32xf32>
    %163 = arith.addf %161, %162 : vector<8x32xf32>
    %164 = math.tanh %163 : vector<8x32xf32>
    %165 = arith.mulf %160, %164 : vector<8x32xf32>
    %166 = vector.extract_strided_slice %9 {offsets = [56, 0], sizes = [8, 128], strides = [1, 1]} : vector<64x128xf32> to vector<8x128xf32>
    %167 = arith.truncf %165 : vector<8x32xf32> to vector<8x32xbf16>
    %cst_35 = arith.constant dense<0.000000e+00> : vector<8x128xf32>
    %168 = tpu.matmul %167, %5, %cst_35 {dimension_numbers = #tpu.dot_dimension_numbers<[1], [0], [0], [1], [0, 0, 1, 1], [], []>} : vector<8x32xbf16>, vector<32x128xbf16>, vector<8x128xf32> -> vector<8x128xf32>
    %169 = arith.addf %166, %168 : vector<8x128xf32>
    %170 = arith.negf %169 : vector<8x128xf32>
    %171 = math.exp %170 : vector<8x128xf32>
    %cst_36 = arith.constant 1.000000e+00 : f32
    %172 = vector.broadcast %cst_36 : f32 to vector<8x128xf32>
    %173 = arith.addf %172, %171 : vector<8x128xf32>
    %174 = arith.divf %172, %173 : vector<8x128xf32>
    %175 = vector.extract_strided_slice %174 {offsets = [0, 0], sizes = [8, 32], strides = [1, 1]} : vector<8x128xf32> to vector<8x32xf32>
    %176 = vector.extract_strided_slice %174 {offsets = [0, 32], sizes = [8, 32], strides = [1, 1]} : vector<8x128xf32> to vector<8x32xf32>
    %177 = vector.extract_strided_slice %174 {offsets = [0, 64], sizes = [8, 32], strides = [1, 1]} : vector<8x128xf32> to vector<8x32xf32>
    %cst_37 = arith.constant 2.000000e+00 : f32
    %178 = vector.broadcast %cst_37 : f32 to vector<8x32xf32>
    %179 = arith.mulf %178, %177 : vector<8x32xf32>
    %cst_38 = arith.constant 1.000000e+00 : f32
    %180 = vector.broadcast %cst_38 : f32 to vector<8x32xf32>
    %181 = arith.subf %179, %180 : vector<8x32xf32>
    %182 = vector.extract_strided_slice %174 {offsets = [0, 96], sizes = [8, 32], strides = [1, 1]} : vector<8x128xf32> to vector<8x32xf32>
    %183 = arith.mulf %176, %163 : vector<8x32xf32>
    %184 = arith.mulf %175, %181 : vector<8x32xf32>
    %185 = arith.addf %183, %184 : vector<8x32xf32>
    %186 = math.tanh %185 : vector<8x32xf32>
    %187 = arith.mulf %182, %186 : vector<8x32xf32>
    %188 = tpu.concatenate %33, %55, %77, %99, %121, %143, %165, %187 in 0 : vector<8x32xf32>, vector<8x32xf32>, vector<8x32xf32>, vector<8x32xf32>, vector<8x32xf32>, vector<8x32xf32>, vector<8x32xf32>, vector<8x32xf32> -> vector<64x32xf32>
    %189 = arith.truncf %188 : vector<64x32xf32> to vector<64x32xbf16>
    %c104 = arith.constant 104 : index
    %c0_39 = arith.constant 0 : index
    %190 = vector.load %arg1[%c104, %c0_39] : memref<216x128xf32, #tpu.memory_space<vmem>>, vector<32x128xf32>
    %191 = arith.truncf %190 : vector<32x128xf32> to vector<32x128xbf16>
    %c136 = arith.constant 136 : index
    %c0_40 = arith.constant 0 : index
    %192 = vector.load %arg1[%c136, %c0_40] : memref<216x128xf32, #tpu.memory_space<vmem>>, vector<32x128xf32>
    %193 = arith.truncf %192 : vector<32x128xf32> to vector<32x128xbf16>
    %c168 = arith.constant 168 : index
    %c0_41 = arith.constant 0 : index
    %194 = vector.load %arg1[%c168, %c0_41] : memref<216x128xf32, #tpu.memory_space<vmem>>, vector<1x128xf32>
    %cst_42 = arith.constant dense<0.000000e+00> : vector<64x128xf32>
    %195 = tpu.matmul %189, %191, %cst_42 {dimension_numbers = #tpu.dot_dimension_numbers<[1], [0], [0], [1], [0, 0, 1, 1], [], []>} : vector<64x32xbf16>, vector<32x128xbf16>, vector<64x128xf32> -> vector<64x128xf32>
    %196 = vector.broadcast %194 : vector<1x128xf32> to vector<64x128xf32>
    %197 = arith.addf %195, %196 : vector<64x128xf32>
    %cst_43 = arith.constant 0.000000e+00 : f32
    %198 = vector.broadcast %cst_43 : f32 to vector<8x32xf32>
    %cst_44 = arith.constant 0.000000e+00 : f32
    %199 = vector.broadcast %cst_44 : f32 to vector<8x32xf32>
    %200 = vector.extract_strided_slice %197 {offsets = [0, 0], sizes = [8, 128], strides = [1, 1]} : vector<64x128xf32> to vector<8x128xf32>
    %201 = arith.truncf %198 : vector<8x32xf32> to vector<8x32xbf16>
    %cst_45 = arith.constant dense<0.000000e+00> : vector<8x128xf32>
    %202 = tpu.matmul %201, %193, %cst_45 {dimension_numbers = #tpu.dot_dimension_numbers<[1], [0], [0], [1], [0, 0, 1, 1], [], []>} : vector<8x32xbf16>, vector<32x128xbf16>, vector<8x128xf32> -> vector<8x128xf32>
    %203 = arith.addf %200, %202 : vector<8x128xf32>
    %204 = arith.negf %203 : vector<8x128xf32>
    %205 = math.exp %204 : vector<8x128xf32>
    %cst_46 = arith.constant 1.000000e+00 : f32
    %206 = vector.broadcast %cst_46 : f32 to vector<8x128xf32>
    %207 = arith.addf %206, %205 : vector<8x128xf32>
    %208 = arith.divf %206, %207 : vector<8x128xf32>
    %209 = vector.extract_strided_slice %208 {offsets = [0, 0], sizes = [8, 32], strides = [1, 1]} : vector<8x128xf32> to vector<8x32xf32>
    %210 = vector.extract_strided_slice %208 {offsets = [0, 32], sizes = [8, 32], strides = [1, 1]} : vector<8x128xf32> to vector<8x32xf32>
    %211 = vector.extract_strided_slice %208 {offsets = [0, 64], sizes = [8, 32], strides = [1, 1]} : vector<8x128xf32> to vector<8x32xf32>
    %cst_47 = arith.constant 2.000000e+00 : f32
    %212 = vector.broadcast %cst_47 : f32 to vector<8x32xf32>
    %213 = arith.mulf %212, %211 : vector<8x32xf32>
    %cst_48 = arith.constant 1.000000e+00 : f32
    %214 = vector.broadcast %cst_48 : f32 to vector<8x32xf32>
    %215 = arith.subf %213, %214 : vector<8x32xf32>
    %216 = vector.extract_strided_slice %208 {offsets = [0, 96], sizes = [8, 32], strides = [1, 1]} : vector<8x128xf32> to vector<8x32xf32>
    %217 = arith.mulf %210, %199 : vector<8x32xf32>
    %218 = arith.mulf %209, %215 : vector<8x32xf32>
    %219 = arith.addf %217, %218 : vector<8x32xf32>
    %220 = math.tanh %219 : vector<8x32xf32>
    %221 = arith.mulf %216, %220 : vector<8x32xf32>
    %222 = vector.extract_strided_slice %197 {offsets = [8, 0], sizes = [8, 128], strides = [1, 1]} : vector<64x128xf32> to vector<8x128xf32>
    %223 = arith.truncf %221 : vector<8x32xf32> to vector<8x32xbf16>
    %cst_49 = arith.constant dense<0.000000e+00> : vector<8x128xf32>
    %224 = tpu.matmul %223, %193, %cst_49 {dimension_numbers = #tpu.dot_dimension_numbers<[1], [0], [0], [1], [0, 0, 1, 1], [], []>} : vector<8x32xbf16>, vector<32x128xbf16>, vector<8x128xf32> -> vector<8x128xf32>
    %225 = arith.addf %222, %224 : vector<8x128xf32>
    %226 = arith.negf %225 : vector<8x128xf32>
    %227 = math.exp %226 : vector<8x128xf32>
    %cst_50 = arith.constant 1.000000e+00 : f32
    %228 = vector.broadcast %cst_50 : f32 to vector<8x128xf32>
    %229 = arith.addf %228, %227 : vector<8x128xf32>
    %230 = arith.divf %228, %229 : vector<8x128xf32>
    %231 = vector.extract_strided_slice %230 {offsets = [0, 0], sizes = [8, 32], strides = [1, 1]} : vector<8x128xf32> to vector<8x32xf32>
    %232 = vector.extract_strided_slice %230 {offsets = [0, 32], sizes = [8, 32], strides = [1, 1]} : vector<8x128xf32> to vector<8x32xf32>
    %233 = vector.extract_strided_slice %230 {offsets = [0, 64], sizes = [8, 32], strides = [1, 1]} : vector<8x128xf32> to vector<8x32xf32>
    %cst_51 = arith.constant 2.000000e+00 : f32
    %234 = vector.broadcast %cst_51 : f32 to vector<8x32xf32>
    %235 = arith.mulf %234, %233 : vector<8x32xf32>
    %cst_52 = arith.constant 1.000000e+00 : f32
    %236 = vector.broadcast %cst_52 : f32 to vector<8x32xf32>
    %237 = arith.subf %235, %236 : vector<8x32xf32>
    %238 = vector.extract_strided_slice %230 {offsets = [0, 96], sizes = [8, 32], strides = [1, 1]} : vector<8x128xf32> to vector<8x32xf32>
    %239 = arith.mulf %232, %219 : vector<8x32xf32>
    %240 = arith.mulf %231, %237 : vector<8x32xf32>
    %241 = arith.addf %239, %240 : vector<8x32xf32>
    %242 = math.tanh %241 : vector<8x32xf32>
    %243 = arith.mulf %238, %242 : vector<8x32xf32>
    %244 = vector.extract_strided_slice %197 {offsets = [16, 0], sizes = [8, 128], strides = [1, 1]} : vector<64x128xf32> to vector<8x128xf32>
    %245 = arith.truncf %243 : vector<8x32xf32> to vector<8x32xbf16>
    %cst_53 = arith.constant dense<0.000000e+00> : vector<8x128xf32>
    %246 = tpu.matmul %245, %193, %cst_53 {dimension_numbers = #tpu.dot_dimension_numbers<[1], [0], [0], [1], [0, 0, 1, 1], [], []>} : vector<8x32xbf16>, vector<32x128xbf16>, vector<8x128xf32> -> vector<8x128xf32>
    %247 = arith.addf %244, %246 : vector<8x128xf32>
    %248 = arith.negf %247 : vector<8x128xf32>
    %249 = math.exp %248 : vector<8x128xf32>
    %cst_54 = arith.constant 1.000000e+00 : f32
    %250 = vector.broadcast %cst_54 : f32 to vector<8x128xf32>
    %251 = arith.addf %250, %249 : vector<8x128xf32>
    %252 = arith.divf %250, %251 : vector<8x128xf32>
    %253 = vector.extract_strided_slice %252 {offsets = [0, 0], sizes = [8, 32], strides = [1, 1]} : vector<8x128xf32> to vector<8x32xf32>
    %254 = vector.extract_strided_slice %252 {offsets = [0, 32], sizes = [8, 32], strides = [1, 1]} : vector<8x128xf32> to vector<8x32xf32>
    %255 = vector.extract_strided_slice %252 {offsets = [0, 64], sizes = [8, 32], strides = [1, 1]} : vector<8x128xf32> to vector<8x32xf32>
    %cst_55 = arith.constant 2.000000e+00 : f32
    %256 = vector.broadcast %cst_55 : f32 to vector<8x32xf32>
    %257 = arith.mulf %256, %255 : vector<8x32xf32>
    %cst_56 = arith.constant 1.000000e+00 : f32
    %258 = vector.broadcast %cst_56 : f32 to vector<8x32xf32>
    %259 = arith.subf %257, %258 : vector<8x32xf32>
    %260 = vector.extract_strided_slice %252 {offsets = [0, 96], sizes = [8, 32], strides = [1, 1]} : vector<8x128xf32> to vector<8x32xf32>
    %261 = arith.mulf %254, %241 : vector<8x32xf32>
    %262 = arith.mulf %253, %259 : vector<8x32xf32>
    %263 = arith.addf %261, %262 : vector<8x32xf32>
    %264 = math.tanh %263 : vector<8x32xf32>
    %265 = arith.mulf %260, %264 : vector<8x32xf32>
    %266 = vector.extract_strided_slice %197 {offsets = [24, 0], sizes = [8, 128], strides = [1, 1]} : vector<64x128xf32> to vector<8x128xf32>
    %267 = arith.truncf %265 : vector<8x32xf32> to vector<8x32xbf16>
    %cst_57 = arith.constant dense<0.000000e+00> : vector<8x128xf32>
    %268 = tpu.matmul %267, %193, %cst_57 {dimension_numbers = #tpu.dot_dimension_numbers<[1], [0], [0], [1], [0, 0, 1, 1], [], []>} : vector<8x32xbf16>, vector<32x128xbf16>, vector<8x128xf32> -> vector<8x128xf32>
    %269 = arith.addf %266, %268 : vector<8x128xf32>
    %270 = arith.negf %269 : vector<8x128xf32>
    %271 = math.exp %270 : vector<8x128xf32>
    %cst_58 = arith.constant 1.000000e+00 : f32
    %272 = vector.broadcast %cst_58 : f32 to vector<8x128xf32>
    %273 = arith.addf %272, %271 : vector<8x128xf32>
    %274 = arith.divf %272, %273 : vector<8x128xf32>
    %275 = vector.extract_strided_slice %274 {offsets = [0, 0], sizes = [8, 32], strides = [1, 1]} : vector<8x128xf32> to vector<8x32xf32>
    %276 = vector.extract_strided_slice %274 {offsets = [0, 32], sizes = [8, 32], strides = [1, 1]} : vector<8x128xf32> to vector<8x32xf32>
    %277 = vector.extract_strided_slice %274 {offsets = [0, 64], sizes = [8, 32], strides = [1, 1]} : vector<8x128xf32> to vector<8x32xf32>
    %cst_59 = arith.constant 2.000000e+00 : f32
    %278 = vector.broadcast %cst_59 : f32 to vector<8x32xf32>
    %279 = arith.mulf %278, %277 : vector<8x32xf32>
    %cst_60 = arith.constant 1.000000e+00 : f32
    %280 = vector.broadcast %cst_60 : f32 to vector<8x32xf32>
    %281 = arith.subf %279, %280 : vector<8x32xf32>
    %282 = vector.extract_strided_slice %274 {offsets = [0, 96], sizes = [8, 32], strides = [1, 1]} : vector<8x128xf32> to vector<8x32xf32>
    %283 = arith.mulf %276, %263 : vector<8x32xf32>
    %284 = arith.mulf %275, %281 : vector<8x32xf32>
    %285 = arith.addf %283, %284 : vector<8x32xf32>
    %286 = math.tanh %285 : vector<8x32xf32>
    %287 = arith.mulf %282, %286 : vector<8x32xf32>
    %288 = vector.extract_strided_slice %197 {offsets = [32, 0], sizes = [8, 128], strides = [1, 1]} : vector<64x128xf32> to vector<8x128xf32>
    %289 = arith.truncf %287 : vector<8x32xf32> to vector<8x32xbf16>
    %cst_61 = arith.constant dense<0.000000e+00> : vector<8x128xf32>
    %290 = tpu.matmul %289, %193, %cst_61 {dimension_numbers = #tpu.dot_dimension_numbers<[1], [0], [0], [1], [0, 0, 1, 1], [], []>} : vector<8x32xbf16>, vector<32x128xbf16>, vector<8x128xf32> -> vector<8x128xf32>
    %291 = arith.addf %288, %290 : vector<8x128xf32>
    %292 = arith.negf %291 : vector<8x128xf32>
    %293 = math.exp %292 : vector<8x128xf32>
    %cst_62 = arith.constant 1.000000e+00 : f32
    %294 = vector.broadcast %cst_62 : f32 to vector<8x128xf32>
    %295 = arith.addf %294, %293 : vector<8x128xf32>
    %296 = arith.divf %294, %295 : vector<8x128xf32>
    %297 = vector.extract_strided_slice %296 {offsets = [0, 0], sizes = [8, 32], strides = [1, 1]} : vector<8x128xf32> to vector<8x32xf32>
    %298 = vector.extract_strided_slice %296 {offsets = [0, 32], sizes = [8, 32], strides = [1, 1]} : vector<8x128xf32> to vector<8x32xf32>
    %299 = vector.extract_strided_slice %296 {offsets = [0, 64], sizes = [8, 32], strides = [1, 1]} : vector<8x128xf32> to vector<8x32xf32>
    %cst_63 = arith.constant 2.000000e+00 : f32
    %300 = vector.broadcast %cst_63 : f32 to vector<8x32xf32>
    %301 = arith.mulf %300, %299 : vector<8x32xf32>
    %cst_64 = arith.constant 1.000000e+00 : f32
    %302 = vector.broadcast %cst_64 : f32 to vector<8x32xf32>
    %303 = arith.subf %301, %302 : vector<8x32xf32>
    %304 = vector.extract_strided_slice %296 {offsets = [0, 96], sizes = [8, 32], strides = [1, 1]} : vector<8x128xf32> to vector<8x32xf32>
    %305 = arith.mulf %298, %285 : vector<8x32xf32>
    %306 = arith.mulf %297, %303 : vector<8x32xf32>
    %307 = arith.addf %305, %306 : vector<8x32xf32>
    %308 = math.tanh %307 : vector<8x32xf32>
    %309 = arith.mulf %304, %308 : vector<8x32xf32>
    %310 = vector.extract_strided_slice %197 {offsets = [40, 0], sizes = [8, 128], strides = [1, 1]} : vector<64x128xf32> to vector<8x128xf32>
    %311 = arith.truncf %309 : vector<8x32xf32> to vector<8x32xbf16>
    %cst_65 = arith.constant dense<0.000000e+00> : vector<8x128xf32>
    %312 = tpu.matmul %311, %193, %cst_65 {dimension_numbers = #tpu.dot_dimension_numbers<[1], [0], [0], [1], [0, 0, 1, 1], [], []>} : vector<8x32xbf16>, vector<32x128xbf16>, vector<8x128xf32> -> vector<8x128xf32>
    %313 = arith.addf %310, %312 : vector<8x128xf32>
    %314 = arith.negf %313 : vector<8x128xf32>
    %315 = math.exp %314 : vector<8x128xf32>
    %cst_66 = arith.constant 1.000000e+00 : f32
    %316 = vector.broadcast %cst_66 : f32 to vector<8x128xf32>
    %317 = arith.addf %316, %315 : vector<8x128xf32>
    %318 = arith.divf %316, %317 : vector<8x128xf32>
    %319 = vector.extract_strided_slice %318 {offsets = [0, 0], sizes = [8, 32], strides = [1, 1]} : vector<8x128xf32> to vector<8x32xf32>
    %320 = vector.extract_strided_slice %318 {offsets = [0, 32], sizes = [8, 32], strides = [1, 1]} : vector<8x128xf32> to vector<8x32xf32>
    %321 = vector.extract_strided_slice %318 {offsets = [0, 64], sizes = [8, 32], strides = [1, 1]} : vector<8x128xf32> to vector<8x32xf32>
    %cst_67 = arith.constant 2.000000e+00 : f32
    %322 = vector.broadcast %cst_67 : f32 to vector<8x32xf32>
    %323 = arith.mulf %322, %321 : vector<8x32xf32>
    %cst_68 = arith.constant 1.000000e+00 : f32
    %324 = vector.broadcast %cst_68 : f32 to vector<8x32xf32>
    %325 = arith.subf %323, %324 : vector<8x32xf32>
    %326 = vector.extract_strided_slice %318 {offsets = [0, 96], sizes = [8, 32], strides = [1, 1]} : vector<8x128xf32> to vector<8x32xf32>
    %327 = arith.mulf %320, %307 : vector<8x32xf32>
    %328 = arith.mulf %319, %325 : vector<8x32xf32>
    %329 = arith.addf %327, %328 : vector<8x32xf32>
    %330 = math.tanh %329 : vector<8x32xf32>
    %331 = arith.mulf %326, %330 : vector<8x32xf32>
    %332 = vector.extract_strided_slice %197 {offsets = [48, 0], sizes = [8, 128], strides = [1, 1]} : vector<64x128xf32> to vector<8x128xf32>
    %333 = arith.truncf %331 : vector<8x32xf32> to vector<8x32xbf16>
    %cst_69 = arith.constant dense<0.000000e+00> : vector<8x128xf32>
    %334 = tpu.matmul %333, %193, %cst_69 {dimension_numbers = #tpu.dot_dimension_numbers<[1], [0], [0], [1], [0, 0, 1, 1], [], []>} : vector<8x32xbf16>, vector<32x128xbf16>, vector<8x128xf32> -> vector<8x128xf32>
    %335 = arith.addf %332, %334 : vector<8x128xf32>
    %336 = arith.negf %335 : vector<8x128xf32>
    %337 = math.exp %336 : vector<8x128xf32>
    %cst_70 = arith.constant 1.000000e+00 : f32
    %338 = vector.broadcast %cst_70 : f32 to vector<8x128xf32>
    %339 = arith.addf %338, %337 : vector<8x128xf32>
    %340 = arith.divf %338, %339 : vector<8x128xf32>
    %341 = vector.extract_strided_slice %340 {offsets = [0, 0], sizes = [8, 32], strides = [1, 1]} : vector<8x128xf32> to vector<8x32xf32>
    %342 = vector.extract_strided_slice %340 {offsets = [0, 32], sizes = [8, 32], strides = [1, 1]} : vector<8x128xf32> to vector<8x32xf32>
    %343 = vector.extract_strided_slice %340 {offsets = [0, 64], sizes = [8, 32], strides = [1, 1]} : vector<8x128xf32> to vector<8x32xf32>
    %cst_71 = arith.constant 2.000000e+00 : f32
    %344 = vector.broadcast %cst_71 : f32 to vector<8x32xf32>
    %345 = arith.mulf %344, %343 : vector<8x32xf32>
    %cst_72 = arith.constant 1.000000e+00 : f32
    %346 = vector.broadcast %cst_72 : f32 to vector<8x32xf32>
    %347 = arith.subf %345, %346 : vector<8x32xf32>
    %348 = vector.extract_strided_slice %340 {offsets = [0, 96], sizes = [8, 32], strides = [1, 1]} : vector<8x128xf32> to vector<8x32xf32>
    %349 = arith.mulf %342, %329 : vector<8x32xf32>
    %350 = arith.mulf %341, %347 : vector<8x32xf32>
    %351 = arith.addf %349, %350 : vector<8x32xf32>
    %352 = math.tanh %351 : vector<8x32xf32>
    %353 = arith.mulf %348, %352 : vector<8x32xf32>
    %354 = vector.extract_strided_slice %197 {offsets = [56, 0], sizes = [8, 128], strides = [1, 1]} : vector<64x128xf32> to vector<8x128xf32>
    %355 = arith.truncf %353 : vector<8x32xf32> to vector<8x32xbf16>
    %cst_73 = arith.constant dense<0.000000e+00> : vector<8x128xf32>
    %356 = tpu.matmul %355, %193, %cst_73 {dimension_numbers = #tpu.dot_dimension_numbers<[1], [0], [0], [1], [0, 0, 1, 1], [], []>} : vector<8x32xbf16>, vector<32x128xbf16>, vector<8x128xf32> -> vector<8x128xf32>
    %357 = arith.addf %354, %356 : vector<8x128xf32>
    %358 = arith.negf %357 : vector<8x128xf32>
    %359 = math.exp %358 : vector<8x128xf32>
    %cst_74 = arith.constant 1.000000e+00 : f32
    %360 = vector.broadcast %cst_74 : f32 to vector<8x128xf32>
    %361 = arith.addf %360, %359 : vector<8x128xf32>
    %362 = arith.divf %360, %361 : vector<8x128xf32>
    %363 = vector.extract_strided_slice %362 {offsets = [0, 0], sizes = [8, 32], strides = [1, 1]} : vector<8x128xf32> to vector<8x32xf32>
    %364 = vector.extract_strided_slice %362 {offsets = [0, 32], sizes = [8, 32], strides = [1, 1]} : vector<8x128xf32> to vector<8x32xf32>
    %365 = vector.extract_strided_slice %362 {offsets = [0, 64], sizes = [8, 32], strides = [1, 1]} : vector<8x128xf32> to vector<8x32xf32>
    %cst_75 = arith.constant 2.000000e+00 : f32
    %366 = vector.broadcast %cst_75 : f32 to vector<8x32xf32>
    %367 = arith.mulf %366, %365 : vector<8x32xf32>
    %cst_76 = arith.constant 1.000000e+00 : f32
    %368 = vector.broadcast %cst_76 : f32 to vector<8x32xf32>
    %369 = arith.subf %367, %368 : vector<8x32xf32>
    %370 = vector.extract_strided_slice %362 {offsets = [0, 96], sizes = [8, 32], strides = [1, 1]} : vector<8x128xf32> to vector<8x32xf32>
    %371 = arith.mulf %364, %351 : vector<8x32xf32>
    %372 = arith.mulf %363, %369 : vector<8x32xf32>
    %373 = arith.addf %371, %372 : vector<8x32xf32>
    %374 = math.tanh %373 : vector<8x32xf32>
    %375 = arith.mulf %370, %374 : vector<8x32xf32>
    %c176 = arith.constant 176 : index
    %c0_77 = arith.constant 0 : index
    %376 = vector.load %arg1[%c176, %c0_77] : memref<216x128xf32, #tpu.memory_space<vmem>>, vector<32x16xf32>
    %377 = arith.truncf %376 : vector<32x16xf32> to vector<32x16xbf16>
    %c208 = arith.constant 208 : index
    %c0_78 = arith.constant 0 : index
    %378 = vector.load %arg1[%c208, %c0_78] : memref<216x128xf32, #tpu.memory_space<vmem>>, vector<1x16xf32>
    %379 = arith.truncf %375 : vector<8x32xf32> to vector<8x32xbf16>
    %cst_79 = arith.constant dense<0.000000e+00> : vector<8x16xf32>
    %380 = tpu.matmul %379, %377, %cst_79 {dimension_numbers = #tpu.dot_dimension_numbers<[1], [0], [0], [1], [0, 0, 1, 1], [], []>} : vector<8x32xbf16>, vector<32x16xbf16>, vector<8x16xf32> -> vector<8x16xf32>
    %381 = vector.broadcast %378 : vector<1x16xf32> to vector<8x16xf32>
    %382 = arith.addf %380, %381 : vector<8x16xf32>
    %383 = vector.extract_strided_slice %382 {offsets = [0, 0], sizes = [2, 16], strides = [1, 1]} : vector<8x16xf32> to vector<2x16xf32>
    %c0_80 = arith.constant 0 : index
    %c0_81 = arith.constant 0 : index
    %384 = vector.load %arg2[%c0_80, %c0_81] : memref<2x16xf32, #tpu.memory_space<vmem>>, vector<2x16xf32>
    tpu.vector_store %arg2[%c0_80, %c0_81], %383 {strides = array<i32>} : memref<2x16xf32, #tpu.memory_space<vmem>>, vector<2x16xf32>,
    return
  }
}

</mosaic_0001>

<llo_original>
// kernel: tpu_custom_call.1
$region0: #{tpu_custom_call.1}
  #allocation0 [shape = 'u32[]', space=smem, size = 0x4, offset = 0x4, fixed_abs, tag = 'smem constant byte address 0x4 - core index']
  #allocation1 [shape = 'u32[72,128]{1,0:T(1,128)}', space=vmem, size = 0x9000, scoped, tag = 'internal scratch']
  %s0 = inlined_call_operand.hbm [shape: f32[64,64], index: 0, kind: input, shape index: {}]
  %s1 = inlined_call_operand.hbm [shape: f32[216,128], index: 1, kind: input, shape index: {}]
  %s2 = inlined_call_operand.hbm [shape: f32[2,16], index: 2, kind: output, shape index: {}]
  %s3 = sld [smem:[#allocation0]]
  $region26: #{tpu_custom_call.1} parent=0
    _
  %s5 = ssub.s32 1, %s3
  %s6 = scalar_select 0, %s5, %s3
  $region1: #{tpu_custom_call.1} parent=0
    #allocation2 [shape = 'u8[32768]{0}', space=vmem, size = 0x8000, scoped, tag = 'input window, operand 0, single buffered']
    #allocation3 [shape = 's32[1]{0}', space=sflag, size = 0x4, scoped, tag = 'scoped memory for tpu_custom_call.1']
    #allocation4 [shape = 's32[1]{0}', space=sflag, size = 0x4, scoped, tag = 'scoped memory for tpu_custom_call.1']
    #allocation5 [shape = 'u8[110592]{0}', space=vmem, size = 0x1b000, scoped, tag = 'input window, operand 1, single buffered']
    #allocation6 [shape = 's32[1]{0}', space=sflag, size = 0x4, scoped, tag = 'scoped memory for tpu_custom_call.1']
    #allocation7 [shape = 'u8[1024]{0}', space=vmem, size = 0x400, scoped, tag = 'output window, operand 0, single buffered']
    %7 = vsyncpa [#allocation3], 0
    %8 = vsyncpa [#allocation6], 0
    %9 = vsyncpa [#allocation4], 0
    // Predicated region
    $region2: #{tpu_custom_call.1} parent=1 // pred_check
      _
    $region3: #{tpu_custom_call.1} parent=1 // pred_check_branch
      %11 = sbr.rel (0) target = $region5
    $region4: #{tpu_custom_call.1} parent=1 // pred_region
      %13 = vsyncadd [#allocation3], 0
      %s14 = sshll.u32 %s0, 4
      %s15 = int_to_ptr.hbm [resolvable:$true] %s14
      %s16 = sshll.u32 [#allocation2], 4
      %s17 = int_to_ptr.vmem [resolvable:$true] %s16
      %22 = dma.hbm_to_vmem [thread:$0]  %s15, 1024, %s17, [#allocation3], 128, 128, 8
    $region5: #{tpu_custom_call.1} parent=1 // pred_fallthru
      _
    // Predicated region
    $region6: #{tpu_custom_call.1} parent=1 // pred_check
      _
    $region7: #{tpu_custom_call.1} parent=1 // pred_check_branch
      %24 = sbr.rel (0) target = $region9
    $region8: #{tpu_custom_call.1} parent=1 // pred_region
      %26 = vsyncadd [#allocation6], 0
      %s27 = sshll.u32 %s1, 4
      %s28 = int_to_ptr.hbm [resolvable:$true] %s27
      %s29 = sshll.u32 [#allocation5], 4
      %s30 = int_to_ptr.vmem [resolvable:$true] %s29
      %35 = dma.hbm_to_vmem [thread:$0]  %s28, 3456, %s30, [#allocation6], 128, 128, 8
    $region9: #{tpu_custom_call.1} parent=1 // pred_fallthru
      _
    // Predicated region
    $region10: #{tpu_custom_call.1} parent=1 // pred_check
      _
    $region11: #{tpu_custom_call.1} parent=1 // pred_check_branch
      %37 = sbr.rel (0) target = $region13
    $region12: #{tpu_custom_call.1} parent=1 // pred_region
      %39 = dma.done [#allocation3], 1024
    $region13: #{tpu_custom_call.1} parent=1 // pred_fallthru
      _
    // Predicated region
    $region14: #{tpu_custom_call.1} parent=1 // pred_check
      _
    $region15: #{tpu_custom_call.1} parent=1 // pred_check_branch
      %41 = sbr.rel (0) target = $region17
    $region16: #{tpu_custom_call.1} parent=1 // pred_region
      %43 = dma.done [#allocation6], 3456
    $region17: #{tpu_custom_call.1} parent=1 // pred_fallthru
      _
    %v45 = vld [vmem:[#allocation2] sm:$0xff]
    %v46 = vld [vmem:[#allocation2 + $0x8] sm:$0xff]
    %v47 = vld [vmem:[#allocation2 + $0x10] sm:$0xff]
    %v48 = vld [vmem:[#allocation2 + $0x18] sm:$0xff]
    %v49 = vld [vmem:[#allocation2 + $0x20] sm:$0xff]
    %v50 = vld [vmem:[#allocation2 + $0x28] sm:$0xff]
    %v51 = vld [vmem:[#allocation2 + $0x30] sm:$0xff]
    %v52 = vld [vmem:[#allocation2 + $0x38] sm:$0xff]
    %v53 = vpack.c.bf16 %v46, %v45
    %v54 = vpack.c.bf16 %v48, %v47
    %v55 = vpack.c.bf16 %v50, %v49
    %v56 = vpack.c.bf16 %v52, %v51
    %v57 = vld [vmem:[#allocation5] sm:$0xff]
    %v58 = vld [vmem:[#allocation5 + $0x8] sm:$0xff]
    %v59 = vld [vmem:[#allocation5 + $0x10] sm:$0xff]
    %v60 = vld [vmem:[#allocation5 + $0x18] sm:$0xff]
    %v61 = vld [vmem:[#allocation5 + $0x20] sm:$0xff]
    %v62 = vld [vmem:[#allocation5 + $0x28] sm:$0xff]
    %v63 = vld [vmem:[#allocation5 + $0x30] sm:$0xff]
    %v64 = vld [vmem:[#allocation5 + $0x38] sm:$0xff]
    %v65 = vpack.c.bf16 %v58, %v57
    %v66 = vpack.c.bf16 %v60, %v59
    %v67 = vpack.c.bf16 %v62, %v61
    %v68 = vpack.c.bf16 %v64, %v63
    %v69 = vld [vmem:[#allocation5 + $0x40] sm:$0xff]
    %v70 = vld [vmem:[#allocation5 + $0x48] sm:$0xff]
    %v71 = vld [vmem:[#allocation5 + $0x50] sm:$0xff]
    %v72 = vld [vmem:[#allocation5 + $0x58] sm:$0xff]
    %v73 = vpack.c.bf16 %v70, %v69
    %v74 = vpack.c.bf16 %v72, %v71
    %v75 = vld [vmem:[#allocation5 + $0x60] sm:$0x1]
    %v76 = vperm.slane %v75, 0
    %vm77 = vcmask 523264
    %v79 = vsel %vm77, %v53, 0
    %v82 = vsel %vm77, %v54, 0
    %v85 = vsel %vm77, %v55, 0
    %v88 = vsel %vm77, %v56, 0
    %90 = vmatpush.bf16.msra.mxu0 0
    %91 = vmatpush.bf16.msra.mxu0 0
    %92 = vmatpush.bf16.msra.mxu0 0
    %93 = vmatpush.bf16.msra.mxu0 0
    %94 = vmatpush.bf16.msra.mxu0 %v68
    %95 = vmatpush.bf16.msra.mxu0 %v67
    %96 = vmatpush.bf16.msra.mxu0 %v66
    %97 = vmatpush.bf16.msra.mxu0 %v65
    %98 = vmatmul.bf16.gmra.mxu0 %v79
    %v99 = vpop.f32.mrf.mxu0
    %v100 = vadd.f32 %v76, %v99
    %v101 = vpop.f32.mrf.mxu0
    %v102 = vadd.f32 %v76, %v101
    %103 = vmatmul.bf16.gmra.mxu0 %v82
    %v104 = vpop.f32.mrf.mxu0
    %v105 = vadd.f32 %v76, %v104
    %v106 = vpop.f32.mrf.mxu0
    %v107 = vadd.f32 %v76, %v106
    %108 = vmatmul.bf16.gmra.mxu0 %v85
    %v109 = vpop.f32.mrf.mxu0
    %v110 = vadd.f32 %v76, %v109
    %v111 = vpop.f32.mrf.mxu0
    %v112 = vadd.f32 %v76, %v111
    %113 = vmatmul.bf16.gmra.mxu0 %v88
    %v114 = vpop.f32.mrf.mxu0
    %v115 = vadd.f32 %v76, %v114
    %v116 = vpop.f32.mrf.mxu0
    %v117 = vadd.f32 %v76, %v116
    %118 = vdwg.mxu0
    %vm119 = vcmask 261120
    %v121 = vsel %vm119, 0, 0
    %123 = vmatpush.bf16.msra.mxu0 0
    %124 = vmatpush.bf16.msra.mxu0 0
    %125 = vmatpush.bf16.msra.mxu0 0
    %126 = vmatpush.bf16.msra.mxu0 0
    %127 = vmatpush.bf16.msra.mxu0 0
    %128 = vmatpush.bf16.msra.mxu0 0
    %129 = vmatpush.bf16.msra.mxu0 %v74
    %130 = vmatpush.bf16.msra.mxu0 %v73
    %131 = vmatmul.bf16.gmra.mxu0 %v121
    %v132 = vpop.f32.mrf.mxu0
    %v133 = vadd.f32 0.0, %v132
    %v134 = vpop.f32.mrf.mxu0
    %135 = vdwg.mxu0
    %v136 = vadd.f32 %v100, %v133
    %v137 = vxor.u32 %v136, 2147483648
    %v138 = vmul.f32 %v137, 1.442695
    %v139 = vpow.pop %v138
    %v140 = vadd.f32 %v139, 1.0
    %v141 = vrcp.pop %v140
    %v142 = vmul.f32 %v140, %v141
    %v143 = vsub.f32 1.0, %v142
    %v144 = vmul.f32 %v141, %v143
    %v145 = vadd.f32 %v141, %v144
    %vm146 = vweird.f32 %v140
    %vm147 = vweird.f32 %v141
    %vm148 = vmor %vm146, %vm147
    %v149 = vsel %vm148, %v141, %v145
    %v150 = vand.u32 2147483647, %v140
    %vm151 = vcmp.eq.f32.partialorder %v150, 8.507059e+37
    %v152 = vand.u32 %v140, 2147483648
    %v153 = vor.u32 1.1754944e-38, %v152
    %v154 = vsel %vm151, %v153, %v149
    %v155 = vmul.f32 1.0, %v154
    %v156 = vmul.f32 %v155, 2.0
    %v157 = vsub.f32 %v156, 1.0
    %v158 = vmul.f32 %v155, 0.0
    %160 = vrot.lane.b32.xlu0 %v157, 64
    %v161 = vpop.permute.xlu0 %160
    %v163 = vmul.f32 %v155, %v161
    %165 = vrot.lane.b32.xlu0 %v163, 32
    %v166 = vpop.permute.xlu0 %165
    %v168 = vadd.f32 %v158, %v166
    %v169 = vtanh.pop %v168
    %171 = vrot.lane.b32.xlu0 %v169, 64
    %v172 = vpop.permute.xlu0 %171
    %v174 = vmul.f32 %v155, %v172
    %v175 = vpack.c.bf16 %v174, %v174
    %177 = vrot.lane.b32.xlu0 %v175, 32
    %v178 = vpop.permute.xlu0 %177
    %v180 = vsel %vm119, %v178, 0
    %182 = vmatpush.bf16.msra.mxu0 0
    %183 = vmatpush.bf16.msra.mxu0 0
    %184 = vmatpush.bf16.msra.mxu0 0
    %185 = vmatpush.bf16.msra.mxu0 0
    %186 = vmatpush.bf16.msra.mxu0 0
    %187 = vmatpush.bf16.msra.mxu0 0
    %188 = vmatpush.bf16.msra.mxu0 %v74
    %189 = vmatpush.bf16.msra.mxu0 %v73
    %190 = vmatmul.bf16.gmra.mxu0 %v180
    %v191 = vpop.f32.mrf.mxu0
    %v192 = vadd.f32 0.0, %v191
    %v193 = vpop.f32.mrf.mxu0
    %194 = vdwg.mxu0
    %v195 = vadd.f32 %v102, %v192
    %v196 = vxor.u32 %v195, 2147483648
    %v197 = vmul.f32 %v196, 1.442695
    %v198 = vpow.pop %v197
    %v199 = vadd.f32 %v198, 1.0
    %v200 = vrcp.pop %v199
    %v201 = vmul.f32 %v199, %v200
    %v202 = vsub.f32 1.0, %v201
    %v203 = vmul.f32 %v200, %v202
    %v204 = vadd.f32 %v200, %v203
    %vm205 = vweird.f32 %v199
    %vm206 = vweird.f32 %v200
    %vm207 = vmor %vm205, %vm206
    %v208 = vsel %vm207, %v200, %v204
    %v209 = vand.u32 2147483647, %v199
    %vm210 = vcmp.eq.f32.partialorder %v209, 8.507059e+37
    %v211 = vand.u32 %v199, 2147483648
    %v212 = vor.u32 1.1754944e-38, %v211
    %v213 = vsel %vm210, %v212, %v208
    %v214 = vmul.f32 1.0, %v213
    %v215 = vmul.f32 %v214, 2.0
    %v216 = vsub.f32 %v215, 1.0
    %v217 = vmul.f32 %v214, %v168
    %219 = vrot.lane.b32.xlu0 %v216, 64
    %v220 = vpop.permute.xlu0 %219
    %v222 = vmul.f32 %v214, %v220
    %224 = vrot.lane.b32.xlu0 %v222, 32
    %v225 = vpop.permute.xlu0 %224
    %v227 = vadd.f32 %v217, %v225
    %v228 = vtanh.pop %v227
    %230 = vrot.lane.b32.xlu0 %v228, 64
    %v231 = vpop.permute.xlu0 %230
    %v233 = vmul.f32 %v214, %v231
    %v234 = vpack.c.bf16 %v233, %v233
    %236 = vrot.lane.b32.xlu0 %v234, 32
    %v237 = vpop.permute.xlu0 %236
    %v239 = vsel %vm119, %v237, 0
    %241 = vmatpush.bf16.msra.mxu0 0
    %242 = vmatpush.bf16.msra.mxu0 0
    %243 = vmatpush.bf16.msra.mxu0 0
    %244 = vmatpush.bf16.msra.mxu0 0
    %245 = vmatpush.bf16.msra.mxu0 0
    %246 = vmatpush.bf16.msra.mxu0 0
    %247 = vmatpush.bf16.msra.mxu0 %v74
    %248 = vmatpush.bf16.msra.mxu0 %v73
    %249 = vmatmul.bf16.gmra.mxu0 %v239
    %v250 = vpop.f32.mrf.mxu0
    %v251 = vadd.f32 0.0, %v250
    %v252 = vpop.f32.mrf.mxu0
    %253 = vdwg.mxu0
    %v254 = vadd.f32 %v105, %v251
    %v255 = vxor.u32 %v254, 2147483648
    %v256 = vmul.f32 %v255, 1.442695
    %v257 = vpow.pop %v256
    %v258 = vadd.f32 %v257, 1.0
    %v259 = vrcp.pop %v258
    %v260 = vmul.f32 %v258, %v259
    %v261 = vsub.f32 1.0, %v260
    %v262 = vmul.f32 %v259, %v261
    %v263 = vadd.f32 %v259, %v262
    %vm264 = vweird.f32 %v258
    %vm265 = vweird.f32 %v259
    %vm266 = vmor %vm264, %vm265
    %v267 = vsel %vm266, %v259, %v263
    %v268 = vand.u32 2147483647, %v258
    %vm269 = vcmp.eq.f32.partialorder %v268, 8.507059e+37
    %v270 = vand.u32 %v258, 2147483648
    %v271 = vor.u32 1.1754944e-38, %v270
    %v272 = vsel %vm269, %v271, %v267
    %v273 = vmul.f32 1.0, %v272
    %v274 = vmul.f32 %v273, 2.0
    %v275 = vsub.f32 %v274, 1.0
    %v276 = vmul.f32 %v273, %v227
    %278 = vrot.lane.b32.xlu0 %v275, 64
    %v279 = vpop.permute.xlu0 %278
    %v281 = vmul.f32 %v273, %v279
    %283 = vrot.lane.b32.xlu0 %v281, 32
    %v284 = vpop.permute.xlu0 %283
    %v286 = vadd.f32 %v276, %v284
    %v287 = vtanh.pop %v286
    %289 = vrot.lane.b32.xlu0 %v287, 64
    %v290 = vpop.permute.xlu0 %289
    %v292 = vmul.f32 %v273, %v290
    %v293 = vpack.c.bf16 %v292, %v292
    %295 = vrot.lane.b32.xlu0 %v293, 32
    %v296 = vpop.permute.xlu0 %295
    %v298 = vsel %vm119, %v296, 0
    %300 = vmatpush.bf16.msra.mxu0 0
    %301 = vmatpush.bf16.msra.mxu0 0
    %302 = vmatpush.bf16.msra.mxu0 0
    %303 = vmatpush.bf16.msra.mxu0 0
    %304 = vmatpush.bf16.msra.mxu0 0
    %305 = vmatpush.bf16.msra.mxu0 0
    %306 = vmatpush.bf16.msra.mxu0 %v74
    %307 = vmatpush.bf16.msra.mxu0 %v73
    %308 = vmatmul.bf16.gmra.mxu0 %v298
    %v309 = vpop.f32.mrf.mxu0
    %v310 = vadd.f32 0.0, %v309
    %v311 = vpop.f32.mrf.mxu0
    %312 = vdwg.mxu0
    %v313 = vadd.f32 %v107, %v310
    %v314 = vxor.u32 %v313, 2147483648
    %v315 = vmul.f32 %v314, 1.442695
    %v316 = vpow.pop %v315
    %v317 = vadd.f32 %v316, 1.0
    %v318 = vrcp.pop %v317
    %v319 = vmul.f32 %v317, %v318
    %v320 = vsub.f32 1.0, %v319
    %v321 = vmul.f32 %v318, %v320
    %v322 = vadd.f32 %v318, %v321
    %vm323 = vweird.f32 %v317
    %vm324 = vweird.f32 %v318
    %vm325 = vmor %vm323, %vm324
    %v326 = vsel %vm325, %v318, %v322
    %v327 = vand.u32 2147483647, %v317
    %vm328 = vcmp.eq.f32.partialorder %v327, 8.507059e+37
    %v329 = vand.u32 %v317, 2147483648
    %v330 = vor.u32 1.1754944e-38, %v329
    %v331 = vsel %vm328, %v330, %v326
    %v332 = vmul.f32 1.0, %v331
    %v333 = vmul.f32 %v332, 2.0
    %v334 = vsub.f32 %v333, 1.0
    %v335 = vmul.f32 %v332, %v286
    %337 = vrot.lane.b32.xlu0 %v334, 64
    %v338 = vpop.permute.xlu0 %337
    %v340 = vmul.f32 %v332, %v338
    %342 = vrot.lane.b32.xlu0 %v340, 32
    %v343 = vpop.permute.xlu0 %342
    %v345 = vadd.f32 %v335, %v343
    %v346 = vtanh.pop %v345
    %348 = vrot.lane.b32.xlu0 %v346, 64
    %v349 = vpop.permute.xlu0 %348
    %v351 = vmul.f32 %v332, %v349
    %v352 = vpack.c.bf16 %v351, %v351
    %354 = vrot.lane.b32.xlu0 %v352, 32
    %v355 = vpop.permute.xlu0 %354
    %v357 = vsel %vm119, %v355, 0
    %359 = vmatpush.bf16.msra.mxu0 0
    %360 = vmatpush.bf16.msra.mxu0 0
    %361 = vmatpush.bf16.msra.mxu0 0
    %362 = vmatpush.bf16.msra.mxu0 0
    %363 = vmatpush.bf16.msra.mxu0 0
    %364 = vmatpush.bf16.msra.mxu0 0
    %365 = vmatpush.bf16.msra.mxu0 %v74
    %366 = vmatpush.bf16.msra.mxu0 %v73
    %367 = vmatmul.bf16.gmra.mxu0 %v357
    %v368 = vpop.f32.mrf.mxu0
    %v369 = vadd.f32 0.0, %v368
    %v370 = vpop.f32.mrf.mxu0
    %371 = vdwg.mxu0
    %v372 = vadd.f32 %v110, %v369
    %v373 = vxor.u32 %v372, 2147483648
    %v374 = vmul.f32 %v373, 1.442695
    %v375 = vpow.pop %v374
    %v376 = vadd.f32 %v375, 1.0
    %v377 = vrcp.pop %v376
    %v378 = vmul.f32 %v376, %v377
    %v379 = vsub.f32 1.0, %v378
    %v380 = vmul.f32 %v377, %v379
    %v381 = vadd.f32 %v377, %v380
    %vm382 = vweird.f32 %v376
    %vm383 = vweird.f32 %v377
    %vm384 = vmor %vm382, %vm383
    %v385 = vsel %vm384, %v377, %v381
    %v386 = vand.u32 2147483647, %v376
    %vm387 = vcmp.eq.f32.partialorder %v386, 8.507059e+37
    %v388 = vand.u32 %v376, 2147483648
    %v389 = vor.u32 1.1754944e-38, %v388
    %v390 = vsel %vm387, %v389, %v385
    %v391 = vmul.f32 1.0, %v390
    %v392 = vmul.f32 %v391, 2.0
    %v393 = vsub.f32 %v392, 1.0
    %v394 = vmul.f32 %v391, %v345
    %396 = vrot.lane.b32.xlu0 %v393, 64
    %v397 = vpop.permute.xlu0 %396
    %v399 = vmul.f32 %v391, %v397
    %401 = vrot.lane.b32.xlu0 %v399, 32
    %v402 = vpop.permute.xlu0 %401
    %v404 = vadd.f32 %v394, %v402
    %v405 = vtanh.pop %v404
    %407 = vrot.lane.b32.xlu0 %v405, 64
    %v408 = vpop.permute.xlu0 %407
    %v410 = vmul.f32 %v391, %v408
    %v411 = vpack.c.bf16 %v410, %v410
    %413 = vrot.lane.b32.xlu0 %v411, 32
    %v414 = vpop.permute.xlu0 %413
    %v416 = vsel %vm119, %v414, 0
    %418 = vmatpush.bf16.msra.mxu0 0
    %419 = vmatpush.bf16.msra.mxu0 0
    %420 = vmatpush.bf16.msra.mxu0 0
    %421 = vmatpush.bf16.msra.mxu0 0
    %422 = vmatpush.bf16.msra.mxu0 0
    %423 = vmatpush.bf16.msra.mxu0 0
    %424 = vmatpush.bf16.msra.mxu0 %v74
    %425 = vmatpush.bf16.msra.mxu0 %v73
    %426 = vmatmul.bf16.gmra.mxu0 %v416
    %v427 = vpop.f32.mrf.mxu0
    %v428 = vadd.f32 0.0, %v427
    %v429 = vpop.f32.mrf.mxu0
    %430 = vdwg.mxu0
    %v431 = vadd.f32 %v112, %v428
    %v432 = vxor.u32 %v431, 2147483648
    %v433 = vmul.f32 %v432, 1.442695
    %v434 = vpow.pop %v433
    %v435 = vadd.f32 %v434, 1.0
    %v436 = vrcp.pop %v435
    %v437 = vmul.f32 %v435, %v436
    %v438 = vsub.f32 1.0, %v437
    %v439 = vmul.f32 %v436, %v438
    %v440 = vadd.f32 %v436, %v439
    %vm441 = vweird.f32 %v435
    %vm442 = vweird.f32 %v436
    %vm443 = vmor %vm441, %vm442
    %v444 = vsel %vm443, %v436, %v440
    %v445 = vand.u32 2147483647, %v435
    %vm446 = vcmp.eq.f32.partialorder %v445, 8.507059e+37
    %v447 = vand.u32 %v435, 2147483648
    %v448 = vor.u32 1.1754944e-38, %v447
    %v449 = vsel %vm446, %v448, %v444
    %v450 = vmul.f32 1.0, %v449
    %v451 = vmul.f32 %v450, 2.0
    %v452 = vsub.f32 %v451, 1.0
    %v453 = vmul.f32 %v450, %v404
    %455 = vrot.lane.b32.xlu0 %v452, 64
    %v456 = vpop.permute.xlu0 %455
    %v458 = vmul.f32 %v450, %v456
    %460 = vrot.lane.b32.xlu0 %v458, 32
    %v461 = vpop.permute.xlu0 %460
    %v463 = vadd.f32 %v453, %v461
    %v464 = vtanh.pop %v463
    %466 = vrot.lane.b32.xlu0 %v464, 64
    %v467 = vpop.permute.xlu0 %466
    %v469 = vmul.f32 %v450, %v467
    %v470 = vpack.c.bf16 %v469, %v469
    %472 = vrot.lane.b32.xlu0 %v470, 32
    %v473 = vpop.permute.xlu0 %472
    %v475 = vsel %vm119, %v473, 0
    %477 = vmatpush.bf16.msra.mxu0 0
    %478 = vmatpush.bf16.msra.mxu0 0
    %479 = vmatpush.bf16.msra.mxu0 0
    %480 = vmatpush.bf16.msra.mxu0 0
    %481 = vmatpush.bf16.msra.mxu0 0
    %482 = vmatpush.bf16.msra.mxu0 0
    %483 = vmatpush.bf16.msra.mxu0 %v74
    %484 = vmatpush.bf16.msra.mxu0 %v73
    %485 = vmatmul.bf16.gmra.mxu0 %v475
    %v486 = vpop.f32.mrf.mxu0
    %v487 = vadd.f32 0.0, %v486
    %v488 = vpop.f32.mrf.mxu0
    %489 = vdwg.mxu0
    %v490 = vadd.f32 %v115, %v487
    %v491 = vxor.u32 %v490, 2147483648
    %v492 = vmul.f32 %v491, 1.442695
    %v493 = vpow.pop %v492
    %v494 = vadd.f32 %v493, 1.0
    %v495 = vrcp.pop %v494
    %v496 = vmul.f32 %v494, %v495
    %v497 = vsub.f32 1.0, %v496
    %v498 = vmul.f32 %v495, %v497
    %v499 = vadd.f32 %v495, %v498
    %vm500 = vweird.f32 %v494
    %vm501 = vweird.f32 %v495
    %vm502 = vmor %vm500, %vm501
    %v503 = vsel %vm502, %v495, %v499
    %v504 = vand.u32 2147483647, %v494
    %vm505 = vcmp.eq.f32.partialorder %v504, 8.507059e+37
    %v506 = vand.u32 %v494, 2147483648
    %v507 = vor.u32 1.1754944e-38, %v506
    %v508 = vsel %vm505, %v507, %v503
    %v509 = vmul.f32 1.0, %v508
    %v510 = vmul.f32 %v509, 2.0
    %v511 = vsub.f32 %v510, 1.0
    %v512 = vmul.f32 %v509, %v463
    %514 = vrot.lane.b32.xlu0 %v511, 64
    %v515 = vpop.permute.xlu0 %514
    %v517 = vmul.f32 %v509, %v515
    %519 = vrot.lane.b32.xlu0 %v517, 32
    %v520 = vpop.permute.xlu0 %519
    %v522 = vadd.f32 %v512, %v520
    %v523 = vtanh.pop %v522
    %525 = vrot.lane.b32.xlu0 %v523, 64
    %v526 = vpop.permute.xlu0 %525
    %v528 = vmul.f32 %v509, %v526
    %v529 = vpack.c.bf16 %v528, %v528
    %531 = vrot.lane.b32.xlu0 %v529, 32
    %v532 = vpop.permute.xlu0 %531
    %v534 = vsel %vm119, %v532, 0
    %536 = vmatpush.bf16.msra.mxu0 0
    %537 = vmatpush.bf16.msra.mxu0 0
    %538 = vmatpush.bf16.msra.mxu0 0
    %539 = vmatpush.bf16.msra.mxu0 0
    %540 = vmatpush.bf16.msra.mxu0 0
    %541 = vmatpush.bf16.msra.mxu0 0
    %542 = vmatpush.bf16.msra.mxu0 %v74
    %543 = vmatpush.bf16.msra.mxu0 %v73
    %544 = vmatmul.bf16.gmra.mxu0 %v534
    %v545 = vpop.f32.mrf.mxu0
    %v546 = vadd.f32 0.0, %v545
    %v547 = vpop.f32.mrf.mxu0
    %548 = vdwg.mxu0
    %v549 = vadd.f32 %v117, %v546
    %v550 = vxor.u32 %v549, 2147483648
    %v551 = vmul.f32 %v550, 1.442695
    %v552 = vpow.pop %v551
    %v553 = vadd.f32 %v552, 1.0
    %v554 = vrcp.pop %v553
    %v555 = vmul.f32 %v553, %v554
    %v556 = vsub.f32 1.0, %v555
    %v557 = vmul.f32 %v554, %v556
    %v558 = vadd.f32 %v554, %v557
    %vm559 = vweird.f32 %v553
    %vm560 = vweird.f32 %v554
    %vm561 = vmor %vm559, %vm560
    %v562 = vsel %vm561, %v554, %v558
    %v563 = vand.u32 2147483647, %v553
    %vm564 = vcmp.eq.f32.partialorder %v563, 8.507059e+37
    %v565 = vand.u32 %v553, 2147483648
    %v566 = vor.u32 1.1754944e-38, %v565
    %v567 = vsel %vm564, %v566, %v562
    %v568 = vmul.f32 1.0, %v567
    %v569 = vmul.f32 %v568, 2.0
    %v570 = vsub.f32 %v569, 1.0
    %v571 = vmul.f32 %v568, %v522
    %573 = vrot.lane.b32.xlu0 %v570, 64
    %v574 = vpop.permute.xlu0 %573
    %v576 = vmul.f32 %v568, %v574
    %578 = vrot.lane.b32.xlu0 %v576, 32
    %v579 = vpop.permute.xlu0 %578
    %v581 = vadd.f32 %v571, %v579
    %v582 = vtanh.pop %v581
    %584 = vrot.lane.b32.xlu0 %v582, 64
    %v585 = vpop.permute.xlu0 %584
    %v587 = vmul.f32 %v568, %v585
    %v588 = vpack.c.bf16 %v233, %v174
    %v589 = vpack.c.bf16 %v351, %v292
    %v590 = vpack.c.bf16 %v469, %v410
    %v591 = vpack.c.bf16 %v587, %v528
    %v592 = vld [vmem:[#allocation5 + $0x68] sm:$0xff]
    %v593 = vld [vmem:[#allocation5 + $0x70] sm:$0xff]
    %v594 = vld [vmem:[#allocation5 + $0x78] sm:$0xff]
    %v595 = vld [vmem:[#allocation5 + $0x80] sm:$0xff]
    %v596 = vpack.c.bf16 %v593, %v592
    %v597 = vpack.c.bf16 %v595, %v594
    %v598 = vld [vmem:[#allocation5 + $0x88] sm:$0xff]
    %v599 = vld [vmem:[#allocation5 + $0x90] sm:$0xff]
    %v600 = vld [vmem:[#allocation5 + $0x98] sm:$0xff]
    %v601 = vld [vmem:[#allocation5 + $0xa0] sm:$0xff]
    %v602 = vpack.c.bf16 %v599, %v598
    %v603 = vpack.c.bf16 %v601, %v600
    %v604 = vld [vmem:[#allocation5 + $0xa8] sm:$0x1]
    %v605 = vperm.slane %v604, 0
    %610 = vrot.lane.b32.xlu0 %v588, 32
    %v611 = vpop.permute.xlu0 %610
    %612 = vrot.lane.b32.xlu0 %v589, 32
    %v613 = vpop.permute.xlu0 %612
    %614 = vrot.lane.b32.xlu0 %v590, 32
    %v615 = vpop.permute.xlu0 %614
    %616 = vrot.lane.b32.xlu0 %v591, 32
    %v617 = vpop.permute.xlu0 %616
    %v619 = vsel %vm119, %v611, 0
    %v622 = vsel %vm119, %v613, 0
    %v625 = vsel %vm119, %v615, 0
    %v628 = vsel %vm119, %v617, 0
    %630 = vmatpush.bf16.msra.mxu0 0
    %631 = vmatpush.bf16.msra.mxu0 0
    %632 = vmatpush.bf16.msra.mxu0 0
    %633 = vmatpush.bf16.msra.mxu0 0
    %634 = vmatpush.bf16.msra.mxu0 0
    %635 = vmatpush.bf16.msra.mxu0 0
    %636 = vmatpush.bf16.msra.mxu0 %v597
    %637 = vmatpush.bf16.msra.mxu0 %v596
    %638 = vmatmul.bf16.gmra.mxu0 %v619
    %v639 = vpop.f32.mrf.mxu0
    %v640 = vadd.f32 %v605, %v639
    %v641 = vpop.f32.mrf.mxu0
    %v642 = vadd.f32 %v605, %v641
    %643 = vmatmul.bf16.gmra.mxu0 %v622
    %v644 = vpop.f32.mrf.mxu0
    %v645 = vadd.f32 %v605, %v644
    %v646 = vpop.f32.mrf.mxu0
    %v647 = vadd.f32 %v605, %v646
    %648 = vmatmul.bf16.gmra.mxu0 %v625
    %v649 = vpop.f32.mrf.mxu0
    %v650 = vadd.f32 %v605, %v649
    %v651 = vpop.f32.mrf.mxu0
    %v652 = vadd.f32 %v605, %v651
    %653 = vmatmul.bf16.gmra.mxu0 %v628
    %v654 = vpop.f32.mrf.mxu0
    %v655 = vadd.f32 %v605, %v654
    %v656 = vpop.f32.mrf.mxu0
    %v657 = vadd.f32 %v605, %v656
    %658 = vdwg.mxu0
    %659 = vmatpush.bf16.msra.mxu0 0
    %660 = vmatpush.bf16.msra.mxu0 0
    %661 = vmatpush.bf16.msra.mxu0 0
    %662 = vmatpush.bf16.msra.mxu0 0
    %663 = vmatpush.bf16.msra.mxu0 0
    %664 = vmatpush.bf16.msra.mxu0 0
    %665 = vmatpush.bf16.msra.mxu0 %v603
    %666 = vmatpush.bf16.msra.mxu0 %v602
    %667 = vmatmul.bf16.gmra.mxu0 %v121
    %v668 = vpop.f32.mrf.mxu0
    %v669 = vadd.f32 0.0, %v668
    %v670 = vpop.f32.mrf.mxu0
    %671 = vdwg.mxu0
    %v672 = vadd.f32 %v640, %v669
    %v673 = vxor.u32 %v672, 2147483648
    %v674 = vmul.f32 %v673, 1.442695
    %v675 = vpow.pop %v674
    %v676 = vadd.f32 %v675, 1.0
    %v677 = vrcp.pop %v676
    %v678 = vmul.f32 %v676, %v677
    %v679 = vsub.f32 1.0, %v678
    %v680 = vmul.f32 %v677, %v679
    %v681 = vadd.f32 %v677, %v680
    %vm682 = vweird.f32 %v676
    %vm683 = vweird.f32 %v677
    %vm684 = vmor %vm682, %vm683
    %v685 = vsel %vm684, %v677, %v681
    %v686 = vand.u32 2147483647, %v676
    %vm687 = vcmp.eq.f32.partialorder %v686, 8.507059e+37
    %v688 = vand.u32 %v676, 2147483648
    %v689 = vor.u32 1.1754944e-38, %v688
    %v690 = vsel %vm687, %v689, %v685
    %v691 = vmul.f32 1.0, %v690
    %v692 = vmul.f32 %v691, 2.0
    %v693 = vsub.f32 %v692, 1.0
    %v694 = vmul.f32 %v691, 0.0
    %696 = vrot.lane.b32.xlu0 %v693, 64
    %v697 = vpop.permute.xlu0 %696
    %v699 = vmul.f32 %v691, %v697
    %701 = vrot.lane.b32.xlu0 %v699, 32
    %v702 = vpop.permute.xlu0 %701
    %v704 = vadd.f32 %v694, %v702
    %v705 = vtanh.pop %v704
    %707 = vrot.lane.b32.xlu0 %v705, 64
    %v708 = vpop.permute.xlu0 %707
    %v710 = vmul.f32 %v691, %v708
    %v711 = vpack.c.bf16 %v710, %v710
    %713 = vrot.lane.b32.xlu0 %v711, 32
    %v714 = vpop.permute.xlu0 %713
    %v716 = vsel %vm119, %v714, 0
    %718 = vmatpush.bf16.msra.mxu0 0
    %719 = vmatpush.bf16.msra.mxu0 0
    %720 = vmatpush.bf16.msra.mxu0 0
    %721 = vmatpush.bf16.msra.mxu0 0
    %722 = vmatpush.bf16.msra.mxu0 0
    %723 = vmatpush.bf16.msra.mxu0 0
    %724 = vmatpush.bf16.msra.mxu0 %v603
    %725 = vmatpush.bf16.msra.mxu0 %v602
    %726 = vmatmul.bf16.gmra.mxu0 %v716
    %v727 = vpop.f32.mrf.mxu0
    %v728 = vadd.f32 0.0, %v727
    %v729 = vpop.f32.mrf.mxu0
    %730 = vdwg.mxu0
    %v731 = vadd.f32 %v642, %v728
    %v732 = vxor.u32 %v731, 2147483648
    %v733 = vmul.f32 %v732, 1.442695
    %v734 = vpow.pop %v733
    %v735 = vadd.f32 %v734, 1.0
    %v736 = vrcp.pop %v735
    %v737 = vmul.f32 %v735, %v736
    %v738 = vsub.f32 1.0, %v737
    %v739 = vmul.f32 %v736, %v738
    %v740 = vadd.f32 %v736, %v739
    %vm741 = vweird.f32 %v735
    %vm742 = vweird.f32 %v736
    %vm743 = vmor %vm741, %vm742
    %v744 = vsel %vm743, %v736, %v740
    %v745 = vand.u32 2147483647, %v735
    %vm746 = vcmp.eq.f32.partialorder %v745, 8.507059e+37
    %v747 = vand.u32 %v735, 2147483648
    %v748 = vor.u32 1.1754944e-38, %v747
    %v749 = vsel %vm746, %v748, %v744
    %v750 = vmul.f32 1.0, %v749
    %v751 = vmul.f32 %v750, 2.0
    %v752 = vsub.f32 %v751, 1.0
    %v753 = vmul.f32 %v750, %v704
    %755 = vrot.lane.b32.xlu0 %v752, 64
    %v756 = vpop.permute.xlu0 %755
    %v758 = vmul.f32 %v750, %v756
    %760 = vrot.lane.b32.xlu0 %v758, 32
    %v761 = vpop.permute.xlu0 %760
    %v763 = vadd.f32 %v753, %v761
    %v764 = vtanh.pop %v763
    %766 = vrot.lane.b32.xlu0 %v764, 64
    %v767 = vpop.permute.xlu0 %766
    %v769 = vmul.f32 %v750, %v767
    %v770 = vpack.c.bf16 %v769, %v769
    %772 = vrot.lane.b32.xlu0 %v770, 32
    %v773 = vpop.permute.xlu0 %772
    %v775 = vsel %vm119, %v773, 0
    %777 = vmatpush.bf16.msra.mxu0 0
    %778 = vmatpush.bf16.msra.mxu0 0
    %779 = vmatpush.bf16.msra.mxu0 0
    %780 = vmatpush.bf16.msra.mxu0 0
    %781 = vmatpush.bf16.msra.mxu0 0
    %782 = vmatpush.bf16.msra.mxu0 0
    %783 = vmatpush.bf16.msra.mxu0 %v603
    %784 = vmatpush.bf16.msra.mxu0 %v602
    %785 = vmatmul.bf16.gmra.mxu0 %v775
    %v786 = vpop.f32.mrf.mxu0
    %v787 = vadd.f32 0.0, %v786
    %v788 = vpop.f32.mrf.mxu0
    %789 = vdwg.mxu0
    %v790 = vadd.f32 %v645, %v787
    %v791 = vxor.u32 %v790, 2147483648
    %v792 = vmul.f32 %v791, 1.442695
    %v793 = vpow.pop %v792
    %v794 = vadd.f32 %v793, 1.0
    %v795 = vrcp.pop %v794
    %v796 = vmul.f32 %v794, %v795
    %v797 = vsub.f32 1.0, %v796
    %v798 = vmul.f32 %v795, %v797
    %v799 = vadd.f32 %v795, %v798
    %vm800 = vweird.f32 %v794
    %vm801 = vweird.f32 %v795
    %vm802 = vmor %vm800, %vm801
    %v803 = vsel %vm802, %v795, %v799
    %v804 = vand.u32 2147483647, %v794
    %vm805 = vcmp.eq.f32.partialorder %v804, 8.507059e+37
    %v806 = vand.u32 %v794, 2147483648
    %v807 = vor.u32 1.1754944e-38, %v806
    %v808 = vsel %vm805, %v807, %v803
    %v809 = vmul.f32 1.0, %v808
    %v810 = vmul.f32 %v809, 2.0
    %v811 = vsub.f32 %v810, 1.0
    %v812 = vmul.f32 %v809, %v763
    %814 = vrot.lane.b32.xlu0 %v811, 64
    %v815 = vpop.permute.xlu0 %814
    %v817 = vmul.f32 %v809, %v815
    %819 = vrot.lane.b32.xlu0 %v817, 32
    %v820 = vpop.permute.xlu0 %819
    %v822 = vadd.f32 %v812, %v820
    %v823 = vtanh.pop %v822
    %825 = vrot.lane.b32.xlu0 %v823, 64
    %v826 = vpop.permute.xlu0 %825
    %v828 = vmul.f32 %v809, %v826
    %v829 = vpack.c.bf16 %v828, %v828
    %831 = vrot.lane.b32.xlu0 %v829, 32
    %v832 = vpop.permute.xlu0 %831
    %v834 = vsel %vm119, %v832, 0
    %836 = vmatpush.bf16.msra.mxu0 0
    %837 = vmatpush.bf16.msra.mxu0 0
    %838 = vmatpush.bf16.msra.mxu0 0
    %839 = vmatpush.bf16.msra.mxu0 0
    %840 = vmatpush.bf16.msra.mxu0 0
    %841 = vmatpush.bf16.msra.mxu0 0
    %842 = vmatpush.bf16.msra.mxu0 %v603
    %843 = vmatpush.bf16.msra.mxu0 %v602
    %844 = vmatmul.bf16.gmra.mxu0 %v834
    %v845 = vpop.f32.mrf.mxu0
    %v846 = vadd.f32 0.0, %v845
    %v847 = vpop.f32.mrf.mxu0
    %848 = vdwg.mxu0
    %v849 = vadd.f32 %v647, %v846
    %v850 = vxor.u32 %v849, 2147483648
    %v851 = vmul.f32 %v850, 1.442695
    %v852 = vpow.pop %v851
    %v853 = vadd.f32 %v852, 1.0
    %v854 = vrcp.pop %v853
    %v855 = vmul.f32 %v853, %v854
    %v856 = vsub.f32 1.0, %v855
    %v857 = vmul.f32 %v854, %v856
    %v858 = vadd.f32 %v854, %v857
    %vm859 = vweird.f32 %v853
    %vm860 = vweird.f32 %v854
    %vm861 = vmor %vm859, %vm860
    %v862 = vsel %vm861, %v854, %v858
    %v863 = vand.u32 2147483647, %v853
    %vm864 = vcmp.eq.f32.partialorder %v863, 8.507059e+37
    %v865 = vand.u32 %v853, 2147483648
    %v866 = vor.u32 1.1754944e-38, %v865
    %v867 = vsel %vm864, %v866, %v862
    %v868 = vmul.f32 1.0, %v867
    %v869 = vmul.f32 %v868, 2.0
    %v870 = vsub.f32 %v869, 1.0
    %v871 = vmul.f32 %v868, %v822
    %873 = vrot.lane.b32.xlu0 %v870, 64
    %v874 = vpop.permute.xlu0 %873
    %v876 = vmul.f32 %v868, %v874
    %878 = vrot.lane.b32.xlu0 %v876, 32
    %v879 = vpop.permute.xlu0 %878
    %v881 = vadd.f32 %v871, %v879
    %v882 = vtanh.pop %v881
    %884 = vrot.lane.b32.xlu0 %v882, 64
    %v885 = vpop.permute.xlu0 %884
    %v887 = vmul.f32 %v868, %v885
    %v888 = vpack.c.bf16 %v887, %v887
    %890 = vrot.lane.b32.xlu0 %v888, 32
    %v891 = vpop.permute.xlu0 %890
    %v893 = vsel %vm119, %v891, 0
    %895 = vmatpush.bf16.msra.mxu0 0
    %896 = vmatpush.bf16.msra.mxu0 0
    %897 = vmatpush.bf16.msra.mxu0 0
    %898 = vmatpush.bf16.msra.mxu0 0
    %899 = vmatpush.bf16.msra.mxu0 0
    %900 = vmatpush.bf16.msra.mxu0 0
    %901 = vmatpush.bf16.msra.mxu0 %v603
    %902 = vmatpush.bf16.msra.mxu0 %v602
    %903 = vmatmul.bf16.gmra.mxu0 %v893
    %v904 = vpop.f32.mrf.mxu0
    %v905 = vadd.f32 0.0, %v904
    %v906 = vpop.f32.mrf.mxu0
    %907 = vdwg.mxu0
    %v908 = vadd.f32 %v650, %v905
    %v909 = vxor.u32 %v908, 2147483648
    %v910 = vmul.f32 %v909, 1.442695
    %v911 = vpow.pop %v910
    %v912 = vadd.f32 %v911, 1.0
    %v913 = vrcp.pop %v912
    %v914 = vmul.f32 %v912, %v913
    %v915 = vsub.f32 1.0, %v914
    %v916 = vmul.f32 %v913, %v915
    %v917 = vadd.f32 %v913, %v916
    %vm918 = vweird.f32 %v912
    %vm919 = vweird.f32 %v913
    %vm920 = vmor %vm918, %vm919
    %v921 = vsel %vm920, %v913, %v917
    %v922 = vand.u32 2147483647, %v912
    %vm923 = vcmp.eq.f32.partialorder %v922, 8.507059e+37
    %v924 = vand.u32 %v912, 2147483648
    %v925 = vor.u32 1.1754944e-38, %v924
    %v926 = vsel %vm923, %v925, %v921
    %v927 = vmul.f32 1.0, %v926
    %v928 = vmul.f32 %v927, 2.0
    %v929 = vsub.f32 %v928, 1.0
    %v930 = vmul.f32 %v927, %v881
    %932 = vrot.lane.b32.xlu0 %v929, 64
    %v933 = vpop.permute.xlu0 %932
    %v935 = vmul.f32 %v927, %v933
    %937 = vrot.lane.b32.xlu0 %v935, 32
    %v938 = vpop.permute.xlu0 %937
    %v940 = vadd.f32 %v930, %v938
    %v941 = vtanh.pop %v940
    %943 = vrot.lane.b32.xlu0 %v941, 64
    %v944 = vpop.permute.xlu0 %943
    %v946 = vmul.f32 %v927, %v944
    %v947 = vpack.c.bf16 %v946, %v946
    %949 = vrot.lane.b32.xlu0 %v947, 32
    %v950 = vpop.permute.xlu0 %949
    %v952 = vsel %vm119, %v950, 0
    %954 = vmatpush.bf16.msra.mxu0 0
    %955 = vmatpush.bf16.msra.mxu0 0
    %956 = vmatpush.bf16.msra.mxu0 0
    %957 = vmatpush.bf16.msra.mxu0 0
    %958 = vmatpush.bf16.msra.mxu0 0
    %959 = vmatpush.bf16.msra.mxu0 0
    %960 = vmatpush.bf16.msra.mxu0 %v603
    %961 = vmatpush.bf16.msra.mxu0 %v602
    %962 = vmatmul.bf16.gmra.mxu0 %v952
    %v963 = vpop.f32.mrf.mxu0
    %v964 = vadd.f32 0.0, %v963
    %v965 = vpop.f32.mrf.mxu0
    %966 = vdwg.mxu0
    %v967 = vadd.f32 %v652, %v964
    %v968 = vxor.u32 %v967, 2147483648
    %v969 = vmul.f32 %v968, 1.442695
    %v970 = vpow.pop %v969
    %v971 = vadd.f32 %v970, 1.0
    %v972 = vrcp.pop %v971
    %v973 = vmul.f32 %v971, %v972
    %v974 = vsub.f32 1.0, %v973
    %v975 = vmul.f32 %v972, %v974
    %v976 = vadd.f32 %v972, %v975
    %vm977 = vweird.f32 %v971
    %vm978 = vweird.f32 %v972
    %vm979 = vmor %vm977, %vm978
    %v980 = vsel %vm979, %v972, %v976
    %v981 = vand.u32 2147483647, %v971
    %vm982 = vcmp.eq.f32.partialorder %v981, 8.507059e+37
    %v983 = vand.u32 %v971, 2147483648
    %v984 = vor.u32 1.1754944e-38, %v983
    %v985 = vsel %vm982, %v984, %v980
    %v986 = vmul.f32 1.0, %v985
    %v987 = vmul.f32 %v986, 2.0
    %v988 = vsub.f32 %v987, 1.0
    %v989 = vmul.f32 %v986, %v940
    %991 = vrot.lane.b32.xlu0 %v988, 64
    %v992 = vpop.permute.xlu0 %991
    %v994 = vmul.f32 %v986, %v992
    %996 = vrot.lane.b32.xlu0 %v994, 32
    %v997 = vpop.permute.xlu0 %996
    %v999 = vadd.f32 %v989, %v997
    %v1000 = vtanh.pop %v999
    %1002 = vrot.lane.b32.xlu0 %v1000, 64
    %v1003 = vpop.permute.xlu0 %1002
    %v1005 = vmul.f32 %v986, %v1003
    %v1006 = vpack.c.bf16 %v1005, %v1005
    %1008 = vrot.lane.b32.xlu0 %v1006, 32
    %v1009 = vpop.permute.xlu0 %1008
    %v1011 = vsel %vm119, %v1009, 0
    %1013 = vmatpush.bf16.msra.mxu0 0
    %1014 = vmatpush.bf16.msra.mxu0 0
    %1015 = vmatpush.bf16.msra.mxu0 0
    %1016 = vmatpush.bf16.msra.mxu0 0
    %1017 = vmatpush.bf16.msra.mxu0 0
    %1018 = vmatpush.bf16.msra.mxu0 0
    %1019 = vmatpush.bf16.msra.mxu0 %v603
    %1020 = vmatpush.bf16.msra.mxu0 %v602
    %1021 = vmatmul.bf16.gmra.mxu0 %v1011
    %v1022 = vpop.f32.mrf.mxu0
    %v1023 = vadd.f32 0.0, %v1022
    %v1024 = vpop.f32.mrf.mxu0
    %1025 = vdwg.mxu0
    %v1026 = vadd.f32 %v655, %v1023
    %v1027 = vxor.u32 %v1026, 2147483648
    %v1028 = vmul.f32 %v1027, 1.442695
    %v1029 = vpow.pop %v1028
    %v1030 = vadd.f32 %v1029, 1.0
    %v1031 = vrcp.pop %v1030
    %v1032 = vmul.f32 %v1030, %v1031
    %v1033 = vsub.f32 1.0, %v1032
    %v1034 = vmul.f32 %v1031, %v1033
    %v1035 = vadd.f32 %v1031, %v1034
    %vm1036 = vweird.f32 %v1030
    %vm1037 = vweird.f32 %v1031
    %vm1038 = vmor %vm1036, %vm1037
    %v1039 = vsel %vm1038, %v1031, %v1035
    %v1040 = vand.u32 2147483647, %v1030
    %vm1041 = vcmp.eq.f32.partialorder %v1040, 8.507059e+37
    %v1042 = vand.u32 %v1030, 2147483648
    %v1043 = vor.u32 1.1754944e-38, %v1042
    %v1044 = vsel %vm1041, %v1043, %v1039
    %v1045 = vmul.f32 1.0, %v1044
    %v1046 = vmul.f32 %v1045, 2.0
    %v1047 = vsub.f32 %v1046, 1.0
    %v1048 = vmul.f32 %v1045, %v999
    %1050 = vrot.lane.b32.xlu0 %v1047, 64
    %v1051 = vpop.permute.xlu0 %1050
    %v1053 = vmul.f32 %v1045, %v1051
    %1055 = vrot.lane.b32.xlu0 %v1053, 32
    %v1056 = vpop.permute.xlu0 %1055
    %v1058 = vadd.f32 %v1048, %v1056
    %v1059 = vtanh.pop %v1058
    %1061 = vrot.lane.b32.xlu0 %v1059, 64
    %v1062 = vpop.permute.xlu0 %1061
    %v1064 = vmul.f32 %v1045, %v1062
    %v1065 = vpack.c.bf16 %v1064, %v1064
    %1067 = vrot.lane.b32.xlu0 %v1065, 32
    %v1068 = vpop.permute.xlu0 %1067
    %v1070 = vsel %vm119, %v1068, 0
    %1072 = vmatpush.bf16.msra.mxu0 0
    %1073 = vmatpush.bf16.msra.mxu0 0
    %1074 = vmatpush.bf16.msra.mxu0 0
    %1075 = vmatpush.bf16.msra.mxu0 0
    %1076 = vmatpush.bf16.msra.mxu0 0
    %1077 = vmatpush.bf16.msra.mxu0 0
    %1078 = vmatpush.bf16.msra.mxu0 %v603
    %1079 = vmatpush.bf16.msra.mxu0 %v602
    %1080 = vmatmul.bf16.gmra.mxu0 %v1070
    %v1081 = vpop.f32.mrf.mxu0
    %v1082 = vadd.f32 0.0, %v1081
    %v1083 = vpop.f32.mrf.mxu0
    %1084 = vdwg.mxu0
    %v1085 = vadd.f32 %v657, %v1082
    %v1086 = vxor.u32 %v1085, 2147483648
    %v1087 = vmul.f32 %v1086, 1.442695
    %v1088 = vpow.pop %v1087
    %v1089 = vadd.f32 %v1088, 1.0
    %v1090 = vrcp.pop %v1089
    %v1091 = vmul.f32 %v1089, %v1090
    %v1092 = vsub.f32 1.0, %v1091
    %v1093 = vmul.f32 %v1090, %v1092
    %v1094 = vadd.f32 %v1090, %v1093
    %vm1095 = vweird.f32 %v1089
    %vm1096 = vweird.f32 %v1090
    %vm1097 = vmor %vm1095, %vm1096
    %v1098 = vsel %vm1097, %v1090, %v1094
    %v1099 = vand.u32 2147483647, %v1089
    %vm1100 = vcmp.eq.f32.partialorder %v1099, 8.507059e+37
    %v1101 = vand.u32 %v1089, 2147483648
    %v1102 = vor.u32 1.1754944e-38, %v1101
    %v1103 = vsel %vm1100, %v1102, %v1098
    %v1104 = vmul.f32 1.0, %v1103
    %v1105 = vmul.f32 %v1104, 2.0
    %v1106 = vsub.f32 %v1105, 1.0
    %v1107 = vmul.f32 %v1104, %v1058
    %1109 = vrot.lane.b32.xlu0 %v1106, 64
    %v1110 = vpop.permute.xlu0 %1109
    %v1112 = vmul.f32 %v1104, %v1110
    %1114 = vrot.lane.b32.xlu0 %v1112, 32
    %v1115 = vpop.permute.xlu0 %1114
    %v1117 = vadd.f32 %v1107, %v1115
    %v1118 = vtanh.pop %v1117
    %1120 = vrot.lane.b32.xlu0 %v1118, 64
    %v1121 = vpop.permute.xlu0 %1120
    %v1123 = vmul.f32 %v1104, %v1121
    %v1124 = vld [vmem:[#allocation5 + $0xb0] sm:$0xff]
    %v1125 = vld [vmem:[#allocation5 + $0xb8] sm:$0xff]
    %v1126 = vld [vmem:[#allocation5 + $0xc0] sm:$0xff]
    %v1127 = vld [vmem:[#allocation5 + $0xc8] sm:$0xff]
    %v1128 = vpack.c.bf16 %v1125, %v1124
    %v1129 = vpack.c.bf16 %v1127, %v1126
    %v1130 = vld [vmem:[#allocation5 + $0xd0] sm:$0x1]
    %v1131 = vpack.c.bf16 %v1123, %v1123
    %v1132 = vperm.slane %v1130, 0
    %1134 = vrot.lane.b32.xlu0 %v1131, 32
    %v1135 = vpop.permute.xlu0 %1134
    %v1137 = vsel %vm119, %v1135, 0
    %1139 = vmatpush.bf16.msra.mxu0 0
    %1140 = vmatpush.bf16.msra.mxu0 0
    %1141 = vmatpush.bf16.msra.mxu0 0
    %1142 = vmatpush.bf16.msra.mxu0 0
    %1143 = vmatpush.bf16.msra.mxu0 0
    %1144 = vmatpush.bf16.msra.mxu0 0
    %1145 = vmatpush.bf16.msra.mxu0 %v1129
    %1146 = vmatpush.bf16.msra.mxu0 %v1128
    %1147 = vmatmul.bf16.gmra.mxu0 %v1137
    %v1148 = vpop.f32.mrf.mxu0
    %v1149 = vadd.f32 %v1132, %v1148
    %v1150 = vpop.f32.mrf.mxu0
    %1151 = vdwg.mxu0
    %vm1152 = vcmask 123904
    %1153 = vst.msk [vmem:[#allocation7] sm:$0x3] %vm1152, %v1149
    // Predicated region
    $region18: #{tpu_custom_call.1} parent=1 // pred_check
      _
    $region19: #{tpu_custom_call.1} parent=1 // pred_check_branch
      %1155 = sbr.rel (0) target = $region21
    $region20: #{tpu_custom_call.1} parent=1 // pred_region
      %1157 = vsyncadd [#allocation4], 0
      %s1159 = sshll.u32 [#allocation7], 4
      %s1160 = int_to_ptr.vmem [resolvable:$true] %s1159
      %s1161 = sshll.u32 %s2, 4
      %s1162 = int_to_ptr.hbm [resolvable:$true] %s1161
      %1164 = dma.vmem_to_hbm [thread:$0]  %s1160, 32, %s1162, [#allocation4]
    $region21: #{tpu_custom_call.1} parent=1 // pred_fallthru
      _
    // Predicated region
    $region22: #{tpu_custom_call.1} parent=1 // pred_check
      _
    $region23: #{tpu_custom_call.1} parent=1 // pred_check_branch
      %1166 = sbr.rel (0) target = $region25
    $region24: #{tpu_custom_call.1} parent=1 // pred_region
      %1168 = dma.done [#allocation4], 32
    $region25: #{tpu_custom_call.1} parent=1 // pred_fallthru
      _
    %1169 = vsyncpa [#allocation3], 1
    %1170 = vsyncpa [#allocation6], 1
    %1171 = vsyncpa [#allocation4], 1

</llo_original>
